<compile_context>
chip_gen: v7x
topology: tpu7x:2x2x1
jax: 0.10.0
libtpu: 0.0.40
codegen_flags: <defaults>
</compile_context>

<pallas_src>
import functools

import jax
import jax.numpy as jnp
from jax.experimental import pallas as pl
from jax.experimental.pallas import tpu as pltpu

NUM_CLASSES = 8  # configer.get('data', 'num_classes')


# ---------------------------------------------------------------------------
# Fused kernel: one grid step = one batch row.
#   inputs  (per step): conf (1, C, Ap) f32, tgt (1, 1, Ap) i32,
#                       loc_pred / loc_tgt (1, 4, Ap) f32
#   outputs (per step): per-batch partial sums loc / conf / num_pos, each (1,1,1)
#   scratch          : lz_col (Ap, 1) f32 — column copy of the mining losses
# ---------------------------------------------------------------------------
def _ssd_loss_kernel(conf_ref, tgt_ref, locp_ref, loct_ref,
                     loc_out, conf_out, npos_out, lz_col_ref,
                     *, ktile, a_real):
    _, C, a_pad = conf_ref.shape

    x = conf_ref[0]                                   # (C, Ap) f32, anchors on lanes
    y = tgt_ref[0]                                    # (1, Ap) i32
    lp = locp_ref[0]                                  # (4, Ap)
    lt = loct_ref[0]                                  # (4, Ap)

    pos = (y > 0).astype(jnp.float32)                 # (1, Ap) matched anchors
    valid = (y != -1).astype(jnp.float32)             # ignore_index = -1 mask

    # --- gather x[y] along the class (sublane) axis via one-hot ---------------
    cls_ids = jax.lax.broadcasted_iota(jnp.int32, (C, a_pad), 0)
    onehot = (cls_ids == jnp.clip(y, 0, C - 1)).astype(jnp.float32)
    x_y = jnp.sum(x * onehot, axis=0, keepdims=True)                  # (1, Ap)

    # --- cross entropy (row-stable LSE; identical value to the global-max form)
    xmax = jnp.max(x, axis=0, keepdims=True)
    lse = jnp.log(jnp.sum(jnp.exp(x - xmax), axis=0, keepdims=True)) + xmax
    ce = lse - x_y                                                    # (1, Ap)

    # --- smooth L1 (beta = 1), summed over the 4 box coordinates --------------
    d = lp - lt
    ad = jnp.abs(d)
    sl1 = jnp.sum(jnp.where(ad < 1.0, 0.5 * d * d, ad - 0.5),
                  axis=0, keepdims=True)                              # (1, Ap)

    npos = jnp.sum(pos, keepdims=True)                                # (1, 1)
    loc_out[...] = jnp.reshape(jnp.sum(sl1 * pos, keepdims=True), (1, 1, 1))
    npos_out[...] = jnp.reshape(npos, (1, 1, 1))

    # --- hard negative mining --------------------------------------------------
    num_neg = jnp.clip(3.0 * npos, 1.0, float(a_real - 1))            # (1, 1)
    lz = ce * (1.0 - pos)                                             # conf_loss[pos] = 0

    idx_row = jax.lax.broadcasted_iota(jnp.int32, (1, a_pad), 1)      # anchor index j

    # Padded anchors (lane index >= a_real) must never win the ranking.
    if a_real < a_pad:
        lz = jnp.where(idx_row < a_real, lz, -jnp.inf)

    # Column copy of lz for the k axis of the pairwise comparison.  Only the
    # (1, Ap) vector is transposed (via a cheap (8, Ap) -> (Ap, 8) XLU transpose),
    # never an (Ap, Ap) matrix.
    lz_col_ref[...] = jnp.transpose(jnp.broadcast_to(lz, (8, a_pad)))[:, 0:1]

    # Counting rank, tiled over the k axis in (ktile, Ap) strips:
    #   rank[j] = #{k : L[k] > L[j]} + #{k < j : L[k] == L[j]}   (stable tie-break)
    def strip(s, rank):
        k0 = pl.multiple_of(s * ktile, ktile)
        lz_k = lz_col_ref[pl.ds(k0, ktile), :]                         # (ktile, 1)
        idx_k = k0 + jax.lax.broadcasted_iota(jnp.int32, (ktile, 1), 0)
        gt = (lz_k > lz).astype(jnp.float32)                           # (ktile, Ap)
        eq = jnp.logical_and(lz_k == lz, idx_k < idx_row).astype(jnp.float32)
        return rank + jnp.sum(gt + eq, axis=0, keepdims=True)          # (1, Ap)

    rank = jax.lax.fori_loop(0, a_pad // ktile, strip,
                             jnp.zeros((1, a_pad), jnp.float32))

    neg = (rank < num_neg).astype(jnp.float32)                         # (1, Ap)
    sel = jnp.maximum(pos, neg)                                        # pos | neg
    conf_out[...] = jnp.reshape(
        jnp.sum(ce * sel * valid, keepdims=True), (1, 1, 1))


# ---------------------------------------------------------------------------
# Wrapper: layout plumbing (anchors -> lanes), lane padding, one pallas_call,
# tiny final reduction + normalization in XLA.
# ---------------------------------------------------------------------------
def ssd_multibox_loss(loc_preds, loc_targets, conf_preds, conf_targets,
                      num_classes=NUM_CLASSES):
    B, A, _ = loc_preds.shape
    C = num_classes

    # Anchors on the lane axis.
    conf = jnp.transpose(conf_preds, (0, 2, 1)).astype(jnp.float32)    # (B, C, A)
    lp = jnp.transpose(loc_preds, (0, 2, 1)).astype(jnp.float32)       # (B, 4, A)
    lt = jnp.transpose(loc_targets, (0, 2, 1)).astype(jnp.float32)     # (B, 4, A)
    tgt = conf_targets.reshape(B, 1, A).astype(jnp.int32)              # (B, 1, A)

    # Pad anchors to a multiple of 128 lanes; pad targets with -1 (ignored, and
    # masked to -inf in the kernel so they never rank as hard negatives).
    a_pad = ((A + 127) // 128) * 128
    if a_pad != A:
        pad = a_pad - A
        conf = jnp.pad(conf, ((0, 0), (0, 0), (0, pad)))
        lp = jnp.pad(lp, ((0, 0), (0, 0), (0, pad)))
        lt = jnp.pad(lt, ((0, 0), (0, 0), (0, pad)))
        tgt = jnp.pad(tgt, ((0, 0), (0, 0), (0, pad)), constant_values=-1)

    # k-strip size for the O(A^2) counting rank: keeps VMEM O(A * ktile).
    ktile = 512 if a_pad % 512 == 0 else (256 if a_pad % 256 == 0 else 128)

    kernel = functools.partial(_ssd_loss_kernel, ktile=ktile, a_real=A)

    loc_sum, conf_sum, npos = pl.pallas_call(
        kernel,
        out_shape=(jax.ShapeDtypeStruct((B, 1, 1), jnp.float32),) * 3,
        grid=(B,),
        in_specs=[
            pl.BlockSpec((1, C, a_pad), lambda b: (b, 0, 0)),   # conf logits
            pl.BlockSpec((1, 1, a_pad), lambda b: (b, 0, 0)),   # conf targets
            pl.BlockSpec((1, 4, a_pad), lambda b: (b, 0, 0)),   # loc preds
            pl.BlockSpec((1, 4, a_pad), lambda b: (b, 0, 0)),   # loc targets
        ],
        out_specs=(pl.BlockSpec((1, 1, 1), lambda b: (b, 0, 0)),) * 3,
        scratch_shapes=[pltpu.VMEM((a_pad, 1), jnp.float32)],
        # Each batch step reads/writes its own blocks -> truly parallel (v7x megacore).
        compiler_params=pltpu.CompilerParams(dimension_semantics=("parallel",)),
    )(conf, tgt, lp, lt)

    loc_loss = jnp.sum(loc_sum)
    conf_loss = jnp.sum(conf_sum)
    num_matched = jnp.sum(npos)
    total = loc_loss + conf_loss
    # TODO(synk): the PyTorch module prints 'No matched boxes' / Log.debug; side
    # effects are skipped, only the returned loss value is reproduced.
    return jnp.where(num_matched > 0, total / num_matched, total)


# ---------------------------------------------------------------------------
# Pure-JAX reference (mirrors the PyTorch forward) for a correctness check.
# ---------------------------------------------------------------------------
def _reference_loss(loc_preds, loc_targets, conf_preds, conf_targets, num_classes):
    B, A, _ = loc_preds.shape
    posb = conf_targets > 0
    pos = posb.astype(jnp.float32)
    num_matched = jnp.sum(pos)

    d = loc_preds - loc_targets
    ad = jnp.abs(d)
    sl = jnp.where(ad < 1.0, 0.5 * d * d, ad - 0.5)
    loc_loss = jnp.sum(sl * pos[..., None])

    x = conf_preds.reshape(-1, num_classes)
    y = conf_targets.reshape(-1)
    xmax = jnp.max(x)
    lse_g = jnp.log(jnp.sum(jnp.exp(x - xmax), axis=1)) + xmax
    xy = jnp.take_along_axis(x, jnp.clip(y, 0, num_classes - 1)[:, None], axis=1)[:, 0]
    closs = (lse_g - xy).reshape(B, A) * (1.0 - pos)

    order = jnp.argsort(-closs, axis=1)
    rank = jnp.argsort(order, axis=1)
    num_pos = jnp.sum(posb, axis=1)
    num_neg = jnp.clip(3 * num_pos, 1, A - 1)
    neg = rank < num_neg[:, None]
    sel = jnp.logical_or(posb, neg).astype(jnp.float32)

    xrow = jnp.max(x, axis=1)
    lse_r = jnp.log(jnp.sum(jnp.exp(x - xrow[:, None]), axis=1)) + xrow
    ce = (lse_r - xy).reshape(B, A)
    valid = (conf_targets != -1).astype(jnp.float32)
    conf_loss = jnp.sum(ce * sel * valid)

    return jnp.where(num_matched > 0,
                     (loc_loss + conf_loss) / num_matched,
                     loc_loss + conf_loss)


if __name__ == "__main__":
    key = jax.random.PRNGKey(0)
    B, A, C = 2, 256, NUM_CLASSES
    k1, k2, k3, k4, k5 = jax.random.split(key, 5)

    loc_preds = jax.random.normal(k1, (B, A, 4), jnp.float32)
    loc_targets = jax.random.normal(k2, (B, A, 4), jnp.float32)
    conf_preds = 2.0 * jax.random.normal(k3, (B, A, C), jnp.float32)
    u = jax.random.uniform(k4, (B, A))
    cls = jax.random.randint(k5, (B, A), 1, C)
    # ~20% positives, a few ignore (-1) anchors, rest background (0).
    conf_targets = jnp.where(u < 0.2, cls,
                             jnp.where(u > 0.95, -1, 0)).astype(jnp.int32)

    loss_fn = jax.jit(ssd_multibox_loss)
    loss = loss_fn(loc_preds, loc_targets, conf_preds, conf_targets)
    loss = jax.block_until_ready(loss)

    ref = _reference_loss(loc_preds, loc_targets, conf_preds, conf_targets, C)
    assert jnp.allclose(loss, ref, rtol=1e-3, atol=1e-3), (float(loss), float(ref))
    print("KERNEL_OK")
</pallas_src>

<mosaic_0001>
module attributes {stable_mosaic.version = 11 : i64} {
  func.func @_ssd_loss_kernel(%arg0: i32, %arg1: memref<1x8x256xf32, #tpu.memory_space<vmem>>, %arg2: memref<1x1x256xi32, #tpu.memory_space<vmem>>, %arg3: memref<1x4x256xf32, #tpu.memory_space<vmem>>, %arg4: memref<1x4x256xf32, #tpu.memory_space<vmem>>, %arg5: memref<1x1x1xf32, #tpu.memory_space<vmem>>, %arg6: memref<1x1x1xf32, #tpu.memory_space<vmem>>, %arg7: memref<1x1x1xf32, #tpu.memory_space<vmem>>, %arg8: memref<256x1xf32, #tpu.memory_space<vmem>>) attributes {dimension_semantics = [#tpu.dimension_semantics<parallel>], iteration_bounds = array<i64: 2>, scalar_prefetch = 0 : i64, scratch_operands = 1 : i64, tpu.core_type = #tpu.core_type<tc>, window_params = [{transform_indices = @transform_0, window_bounds = array<i64: 1, 8, 256>}, {transform_indices = @transform_1, window_bounds = array<i64: 1, 1, 256>}, {transform_indices = @transform_2, window_bounds = array<i64: 1, 4, 256>}, {transform_indices = @transform_3, window_bounds = array<i64: 1, 4, 256>}, {transform_indices = @transform_4, window_bounds = array<i64: 1, 1, 1>}, {transform_indices = @transform_5, window_bounds = array<i64: 1, 1, 1>}, {transform_indices = @transform_6, window_bounds = array<i64: 1, 1, 1>}]} {
    %c0 = arith.constant 0 : index
    %c0_0 = arith.constant 0 : index
    %c0_1 = arith.constant 0 : index
    %0 = vector.load %arg1[%c0, %c0_0, %c0_1] : memref<1x8x256xf32, #tpu.memory_space<vmem>>, vector<1x8x256xf32>
    %1 = vector.shape_cast %0 : vector<1x8x256xf32> to vector<8x256xf32>
    %c0_2 = arith.constant 0 : index
    %c0_3 = arith.constant 0 : index
    %c0_4 = arith.constant 0 : index
    %2 = vector.load %arg2[%c0_2, %c0_3, %c0_4] : memref<1x1x256xi32, #tpu.memory_space<vmem>>, vector<1x1x256xi32>
    %3 = vector.shape_cast %2 : vector<1x1x256xi32> to vector<1x256xi32>
    %c0_5 = arith.constant 0 : index
    %c0_6 = arith.constant 0 : index
    %c0_7 = arith.constant 0 : index
    %4 = vector.load %arg3[%c0_5, %c0_6, %c0_7] : memref<1x4x256xf32, #tpu.memory_space<vmem>>, vector<1x4x256xf32>
    %5 = vector.shape_cast %4 : vector<1x4x256xf32> to vector<4x256xf32>
    %c0_8 = arith.constant 0 : index
    %c0_9 = arith.constant 0 : index
    %c0_10 = arith.constant 0 : index
    %6 = vector.load %arg4[%c0_8, %c0_9, %c0_10] : memref<1x4x256xf32, #tpu.memory_space<vmem>>, vector<1x4x256xf32>
    %7 = vector.shape_cast %6 : vector<1x4x256xf32> to vector<4x256xf32>
    %c0_i32 = arith.constant 0 : i32
    %8 = vector.broadcast %c0_i32 : i32 to vector<1x256xi32>
    %9 = arith.cmpi sgt, %3, %8 : vector<1x256xi32>
    %10 = arith.extui %9 : vector<1x256xi1> to vector<1x256xi32>
    %11 = arith.sitofp %10 : vector<1x256xi32> to vector<1x256xf32>
    %c-1_i32 = arith.constant -1 : i32
    %12 = vector.broadcast %c-1_i32 : i32 to vector<1x256xi32>
    %13 = arith.cmpi ne, %3, %12 : vector<1x256xi32>
    %14 = arith.extui %13 : vector<1x256xi1> to vector<1x256xi32>
    %15 = arith.sitofp %14 : vector<1x256xi32> to vector<1x256xf32>
    %16 = tpu.iota {dimensions = array<i32: 0>} : vector<8x256xi32>
    %c0_i32_11 = arith.constant 0 : i32
    %c7_i32 = arith.constant 7 : i32
    %17 = vector.broadcast %c0_i32_11 : i32 to vector<1x256xi32>
    %18 = arith.maxsi %17, %3 : vector<1x256xi32>
    %19 = vector.broadcast %c7_i32 : i32 to vector<1x256xi32>
    %20 = arith.minsi %19, %18 : vector<1x256xi32>
    %21 = vector.broadcast %20 : vector<1x256xi32> to vector<8x256xi32>
    %22 = arith.cmpi eq, %16, %21 : vector<8x256xi32>
    %23 = arith.extui %22 : vector<8x256xi1> to vector<8x256xi32>
    %24 = arith.sitofp %23 : vector<8x256xi32> to vector<8x256xf32>
    %25 = arith.mulf %1, %24 : vector<8x256xf32>
    %cst = arith.constant dense<0.000000e+00> : vector<256xf32>
    %26 = vector.multi_reduction <add>, %25, %cst [0] : vector<8x256xf32> to vector<256xf32>
    %27 = vector.shape_cast %26 : vector<256xf32> to vector<1x256xf32>
    %cst_12 = arith.constant dense<0xFF800000> : vector<256xf32>
    %28 = vector.multi_reduction <maximumf>, %1, %cst_12 [0] : vector<8x256xf32> to vector<256xf32>
    %29 = vector.shape_cast %28 : vector<256xf32> to vector<1x256xf32>
    %30 = vector.broadcast %29 : vector<1x256xf32> to vector<8x256xf32>
    %31 = arith.subf %1, %30 : vector<8x256xf32>
    %32 = math.exp %31 : vector<8x256xf32>
    %cst_13 = arith.constant dense<0.000000e+00> : vector<256xf32>
    %33 = vector.multi_reduction <add>, %32, %cst_13 [0] : vector<8x256xf32> to vector<256xf32>
    %34 = vector.shape_cast %33 : vector<256xf32> to vector<1x256xf32>
    %35 = math.log %34 : vector<1x256xf32>
    %36 = arith.addf %35, %29 : vector<1x256xf32>
    %37 = arith.subf %36, %27 : vector<1x256xf32>
    %38 = arith.subf %5, %7 : vector<4x256xf32>
    %39 = math.absf %38 : vector<4x256xf32>
    %cst_14 = arith.constant 1.000000e+00 : f32
    %40 = vector.broadcast %cst_14 : f32 to vector<4x256xf32>
    %41 = arith.cmpf olt, %39, %40 : vector<4x256xf32>
    %cst_15 = arith.constant 5.000000e-01 : f32
    %42 = vector.broadcast %cst_15 : f32 to vector<4x256xf32>
    %43 = arith.mulf %42, %38 : vector<4x256xf32>
    %44 = arith.mulf %43, %38 : vector<4x256xf32>
    %cst_16 = arith.constant 5.000000e-01 : f32
    %45 = vector.broadcast %cst_16 : f32 to vector<4x256xf32>
    %46 = arith.subf %39, %45 : vector<4x256xf32>
    %47 = arith.select %41, %44, %46 : vector<4x256xi1>, vector<4x256xf32>
    %cst_17 = arith.constant dense<0.000000e+00> : vector<256xf32>
    %48 = vector.multi_reduction <add>, %47, %cst_17 [0] : vector<4x256xf32> to vector<256xf32>
    %49 = vector.shape_cast %48 : vector<256xf32> to vector<1x256xf32>
    %50 = vector.shape_cast %11 : vector<1x256xf32> to vector<1x1x256xf32>
    %cst_18 = arith.constant dense<0.000000e+00> : vector<1xf32>
    %51 = vector.multi_reduction <add>, %50, %cst_18 [1, 2] : vector<1x1x256xf32> to vector<1xf32>
    %52 = vector.shape_cast %51 : vector<1xf32> to vector<1x1x1xf32>
    %53 = vector.extract %52[0, 0, 0] : f32 from vector<1x1x1xf32>
    %54 = vector.broadcast %53 : f32 to vector<1x1xf32>
    %55 = arith.mulf %49, %11 : vector<1x256xf32>
    %56 = vector.shape_cast %55 : vector<1x256xf32> to vector<1x1x256xf32>
    %cst_19 = arith.constant dense<0.000000e+00> : vector<1xf32>
    %57 = vector.multi_reduction <add>, %56, %cst_19 [1, 2] : vector<1x1x256xf32> to vector<1xf32>
    %58 = vector.shape_cast %57 : vector<1xf32> to vector<1x1x1xf32>
    %59 = vector.extract %58[0, 0, 0] : f32 from vector<1x1x1xf32>
    %60 = vector.broadcast %59 : f32 to vector<1x1xf32>
    %61 = vector.shape_cast %60 : vector<1x1xf32> to vector<1x1x1xf32>
    %c0_20 = arith.constant 0 : index
    %c0_21 = arith.constant 0 : index
    %c0_22 = arith.constant 0 : index
    %62 = vector.load %arg5[%c0_20, %c0_21, %c0_22] : memref<1x1x1xf32, #tpu.memory_space<vmem>>, vector<1x1x1xf32>
    tpu.vector_store %arg5[%c0_20, %c0_21, %c0_22], %61 {strides = array<i32>} : memref<1x1x1xf32, #tpu.memory_space<vmem>>, vector<1x1x1xf32>,
    %63 = vector.shape_cast %54 : vector<1x1xf32> to vector<1x1x1xf32>
    %c0_23 = arith.constant 0 : index
    %c0_24 = arith.constant 0 : index
    %c0_25 = arith.constant 0 : index
    %64 = vector.load %arg7[%c0_23, %c0_24, %c0_25] : memref<1x1x1xf32, #tpu.memory_space<vmem>>, vector<1x1x1xf32>
    tpu.vector_store %arg7[%c0_23, %c0_24, %c0_25], %63 {strides = array<i32>} : memref<1x1x1xf32, #tpu.memory_space<vmem>>, vector<1x1x1xf32>,
    %cst_26 = arith.constant 3.000000e+00 : f32
    %65 = vector.broadcast %cst_26 : f32 to vector<1x1xf32>
    %66 = arith.mulf %65, %54 : vector<1x1xf32>
    %cst_27 = arith.constant 1.000000e+00 : f32
    %cst_28 = arith.constant 2.550000e+02 : f32
    %67 = vector.broadcast %cst_27 : f32 to vector<1x1xf32>
    %68 = arith.maximumf %67, %66 : vector<1x1xf32>
    %69 = vector.broadcast %cst_28 : f32 to vector<1x1xf32>
    %70 = arith.minimumf %69, %68 : vector<1x1xf32>
    %cst_29 = arith.constant 1.000000e+00 : f32
    %71 = vector.broadcast %cst_29 : f32 to vector<1x256xf32>
    %72 = arith.subf %71, %11 : vector<1x256xf32>
    %73 = arith.mulf %37, %72 : vector<1x256xf32>
    %74 = tpu.iota {dimensions = array<i32: 1>} : vector<1x256xi32>
    %75 = vector.shape_cast %73 : vector<1x256xf32> to vector<1x256xf32>
    %76 = vector.broadcast %75 : vector<1x256xf32> to vector<8x256xf32>
    %77 = tpu.transpose %76, [1, 0] : vector<8x256xf32> -> vector<256x8xf32>
    %78 = vector.extract_strided_slice %77 {offsets = [0, 0], sizes = [256, 1], strides = [1, 1]} : vector<256x8xf32> to vector<256x1xf32>
    %c0_30 = arith.constant 0 : index
    %c0_31 = arith.constant 0 : index
    %79 = vector.load %arg8[%c0_30, %c0_31] : memref<256x1xf32, #tpu.memory_space<vmem>>, vector<256x1xf32>
    tpu.vector_store %arg8[%c0_30, %c0_31], %78 {strides = array<i32>} : memref<256x1xf32, #tpu.memory_space<vmem>>, vector<256x1xf32>,
    %cst_32 = arith.constant 0.000000e+00 : f32
    %80 = vector.broadcast %cst_32 : f32 to vector<1x256xf32>
    %c0_i32_33 = arith.constant 0 : i32
    %c256_i32 = arith.constant 256 : i32
    %81 = arith.muli %c0_i32_33, %c256_i32 : i32
    %82 = tpu.assume_multiple %81, 256 : i32
    %83 = arith.index_cast %82 : i32 to index
    %c0_34 = arith.constant 0 : index
    %84 = vector.load %arg8[%83, %c0_34] : memref<256x1xf32, #tpu.memory_space<vmem>>, vector<256x1xf32>
    %85 = tpu.iota {dimensions = array<i32: 0>} : vector<256x1xi32>
    %86 = vector.broadcast %82 : i32 to vector<256x1xi32>
    %87 = arith.addi %86, %85 : vector<256x1xi32>
    %88 = vector.broadcast %84 : vector<256x1xf32> to vector<256x256xf32>
    %89 = vector.broadcast %73 : vector<1x256xf32> to vector<256x256xf32>
    %90 = arith.cmpf ogt, %88, %89 : vector<256x256xf32>
    %91 = arith.extui %90 : vector<256x256xi1> to vector<256x256xi32>
    %92 = arith.sitofp %91 : vector<256x256xi32> to vector<256x256xf32>
    %93 = vector.broadcast %84 : vector<256x1xf32> to vector<256x256xf32>
    %94 = vector.broadcast %73 : vector<1x256xf32> to vector<256x256xf32>
    %95 = arith.cmpf oeq, %93, %94 : vector<256x256xf32>
    %96 = vector.broadcast %87 : vector<256x1xi32> to vector<256x256xi32>
    %97 = vector.broadcast %74 : vector<1x256xi32> to vector<256x256xi32>
    %98 = arith.cmpi slt, %96, %97 : vector<256x256xi32>
    %99 = arith.andi %95, %98 : vector<256x256xi1>
    %100 = arith.extui %99 : vector<256x256xi1> to vector<256x256xi32>
    %101 = arith.sitofp %100 : vector<256x256xi32> to vector<256x256xf32>
    %102 = arith.addf %92, %101 : vector<256x256xf32>
    %cst_35 = arith.constant dense<0.000000e+00> : vector<256xf32>
    %103 = vector.multi_reduction <add>, %102, %cst_35 [0] : vector<256x256xf32> to vector<256xf32>
    %104 = vector.shape_cast %103 : vector<256xf32> to vector<1x256xf32>
    %105 = arith.addf %80, %104 : vector<1x256xf32>
    %c1_i32 = arith.constant 1 : i32
    %106 = vector.broadcast %70 : vector<1x1xf32> to vector<1x256xf32>
    %107 = arith.cmpf olt, %105, %106 : vector<1x256xf32>
    %108 = arith.extui %107 : vector<1x256xi1> to vector<1x256xi32>
    %109 = arith.sitofp %108 : vector<1x256xi32> to vector<1x256xf32>
    %110 = arith.maximumf %11, %109 : vector<1x256xf32>
    %111 = arith.mulf %37, %110 : vector<1x256xf32>
    %112 = arith.mulf %111, %15 : vector<1x256xf32>
    %113 = vector.shape_cast %112 : vector<1x256xf32> to vector<1x1x256xf32>
    %cst_36 = arith.constant dense<0.000000e+00> : vector<1xf32>
    %114 = vector.multi_reduction <add>, %113, %cst_36 [1, 2] : vector<1x1x256xf32> to vector<1xf32>
    %115 = vector.shape_cast %114 : vector<1xf32> to vector<1x1x1xf32>
    %116 = vector.extract %115[0, 0, 0] : f32 from vector<1x1x1xf32>
    %117 = vector.broadcast %116 : f32 to vector<1x1xf32>
    %118 = vector.shape_cast %117 : vector<1x1xf32> to vector<1x1x1xf32>
    %c0_37 = arith.constant 0 : index
    %c0_38 = arith.constant 0 : index
    %c0_39 = arith.constant 0 : index
    %119 = vector.load %arg6[%c0_37, %c0_38, %c0_39] : memref<1x1x1xf32, #tpu.memory_space<vmem>>, vector<1x1x1xf32>
    tpu.vector_store %arg6[%c0_37, %c0_38, %c0_39], %118 {strides = array<i32>} : memref<1x1x1xf32, #tpu.memory_space<vmem>>, vector<1x1x1xf32>,
    return
  }
  func.func @transform_0(%arg0: i32) -> (i32, i32, i32) {
    %c0_i32 = arith.constant 0 : i32
    %c0_i32_0 = arith.constant 0 : i32
    %c0_i32_1 = arith.constant 0 : i32
    return %arg0, %c0_i32, %c0_i32_0 : i32, i32, i32
  }
  func.func @transform_1(%arg0: i32) -> (i32, i32, i32) {
    %c0_i32 = arith.constant 0 : i32
    %c0_i32_0 = arith.constant 0 : i32
    %c0_i32_1 = arith.constant 0 : i32
    return %arg0, %c0_i32, %c0_i32_0 : i32, i32, i32
  }
  func.func @transform_2(%arg0: i32) -> (i32, i32, i32) {
    %c0_i32 = arith.constant 0 : i32
    %c0_i32_0 = arith.constant 0 : i32
    %c0_i32_1 = arith.constant 0 : i32
    return %arg0, %c0_i32, %c0_i32_0 : i32, i32, i32
  }
  func.func @transform_3(%arg0: i32) -> (i32, i32, i32) {
    %c0_i32 = arith.constant 0 : i32
    %c0_i32_0 = arith.constant 0 : i32
    %c0_i32_1 = arith.constant 0 : i32
    return %arg0, %c0_i32, %c0_i32_0 : i32, i32, i32
  }
  func.func @transform_4(%arg0: i32) -> (i32, i32, i32) {
    %c0_i32 = arith.constant 0 : i32
    %c0_i32_0 = arith.constant 0 : i32
    %c0_i32_1 = arith.constant 0 : i32
    return %arg0, %c0_i32, %c0_i32_0 : i32, i32, i32
  }
  func.func @transform_5(%arg0: i32) -> (i32, i32, i32) {
    %c0_i32 = arith.constant 0 : i32
    %c0_i32_0 = arith.constant 0 : i32
    %c0_i32_1 = arith.constant 0 : i32
    return %arg0, %c0_i32, %c0_i32_0 : i32, i32, i32
  }
  func.func @transform_6(%arg0: i32) -> (i32, i32, i32) {
    %c0_i32 = arith.constant 0 : i32
    %c0_i32_0 = arith.constant 0 : i32
    %c0_i32_1 = arith.constant 0 : i32
    return %arg0, %c0_i32, %c0_i32_0 : i32, i32, i32
  }
}

</mosaic_0001>

<llo_original>
// kernel: ssd_multibox_loss.1
$region0: #{ssd_multibox_loss.1}
  #allocation0 [shape = 'u32[]', space=smem, size = 0x4, offset = 0x4, fixed_abs, tag = 'smem constant byte address 0x4 - core index']
  #allocation1 [shape = 'u32[144,128]{1,0:T(1,128)}', space=vmem, size = 0x12000, scoped, tag = 'internal scratch']
  #allocation2 [shape = 'f32[256,1]{1,0:T(8,128)}', space=vmem, size = 0x20000, scoped, tag = 'scratch operand']
  %s0 = inlined_call_operand.hbm [shape: f32[2,8,256], index: 0, kind: input, shape index: {}]
  %s1 = inlined_call_operand.vmem [shape: s32[2,1,256], index: 1, kind: input, shape index: {}]
  %s2 = inlined_call_operand.vmem [shape: f32[2,4,256], index: 2, kind: input, shape index: {}]
  %s3 = inlined_call_operand.hbm [shape: f32[2,4,256], index: 3, kind: input, shape index: {}]
  %s4 = inlined_call_operand.vmem [shape: f32[2,1,1], index: 4, kind: output, shape index: {0}]
  %s5 = inlined_call_operand.vmem [shape: f32[2,1,1], index: 5, kind: output, shape index: {1}]
  %s6 = inlined_call_operand.vmem [shape: f32[2,1,1], index: 6, kind: output, shape index: {2}]
  %7 = xla_tuple %s4, %s5, %s6
  %s8 = sld [smem:[#allocation0]]
  $region73: #{ssd_multibox_loss.1} parent=0
    _
  %s10 = ssub.s32 1, %s8
  %s11 = scalar_select 0, %s10, %s8
  $region1: #{ssd_multibox_loss.1} parent=0
    #allocation3 [shape = 'u8[16384]{0}', space=vmem, size = 0x4000, scoped, tag = 'input window, operand 0']
    #allocation4 [shape = 's32[2]{0}', space=sflag, size = 0x8, scoped, tag = 'scoped memory for ssd_multibox_loss.1']
    #allocation5 [shape = 'u8[8192]{0}', space=vmem, size = 0x2000, scoped, tag = 'input window, operand 3']
    #allocation6 [shape = 's32[2]{0}', space=sflag, size = 0x8, scoped, tag = 'scoped memory for ssd_multibox_loss.1']
    %12 = vsyncpa [#allocation4], 0
    %s13 = scalar_lea.sflag [#allocation4], 1
    %14 = vsyncpa %s13, 0
    %15 = vsyncpa [#allocation6], 0
    %s16 = scalar_lea.sflag [#allocation6], 1
    %17 = vsyncpa %s16, 0
    loop: start=0, step=1, limit=4
    $region2: #{ssd_multibox_loss.1} parent=1 // loop_pre_header
      _
    $region3: #{ssd_multibox_loss.1} parent=1 // loop_header
      %s19 = sphi 0, %s23
      %p20 = scmp.ge.s32.totalorder %s19, 4
      %s29 = sphi 0, %s31
      %s32 = sphi 0, %s29
      %s33 = sphi 0, %s32
      %s49 = sphi 0, %s33
      %s55 = sphi 0, %s57
      %s58 = sphi 0, %s55
      %s59 = sphi 0, %s58
      %s75 = sphi 0, %s59
      %s81 = sphi 0, %s83
      %s84 = sphi 0, %s81
      %s85 = sphi 0, %s84
      %s101 = sphi 0, %s85
      %s107 = sphi 0, %s109
      %s110 = sphi 0, %s107
      %s111 = sphi 0, %s110
      %s127 = sphi 0, %s111
      %s133 = sphi 0, %s135
      %s136 = sphi 0, %s133
      %s137 = sphi 0, %s136
      %s153 = sphi 0, %s137
      %s159 = sphi 0, %s161
      %s162 = sphi 0, %s159
      %s163 = sphi 0, %s162
      %s179 = sphi 0, %s163
      %s185 = sphi 0, %s187
      %s188 = sphi 0, %s185
      %s189 = sphi 0, %s188
      %s205 = sphi 0, %s189
    $region4: #{ssd_multibox_loss.1} parent=1 // loop_header_branch
      %22 = sbr.rel (%p20) target = $region8
    $region5: #{ssd_multibox_loss.1} parent=1 // loop_body
      %s24 = ssub.s32 %s19, 1
      %s25 = ssub.s32 %s19, 2
      %s26 = sadd.s32 %s19, 1
      %s27 = ssub.s32 %s19, %s26
      %p28 = scmp.eq.s32.totalorder %s27, 0
      %s30 = sadd.s32 %s29, 1
      %s31 = scalar_select %p28, %s29, %s30
      %p34 = pneg %p28
      %p35 = scmp.eq.s32.totalorder %s19, 1
      %p36 = por %p34, %p35
      %p37 = scmp.ne.s32.totalorder %s29, %s32
      %p38 = scmp.eq.s32.totalorder %s19, 0
      %p39 = por %p37, %p38
      %p40 = scmp.ne.s32.totalorder %s29, %s32
      %p41 = scmp.eq.s32.totalorder %s24, 1
      %p42 = por %p40, %p41
      %p43 = scmp.ne.s32.totalorder %s32, %s33
      %p44 = scmp.eq.s32.totalorder %s24, 0
      %p45 = por %p43, %p44
      %p46 = scmp.ne.s32.totalorder %s32, %s33
      %p47 = scmp.eq.s32.totalorder %s25, 1
      %p48 = por %p46, %p47
      %p50 = scmp.ne.s32.totalorder %s33, %s49
      %p51 = scmp.eq.s32.totalorder %s25, 0
      %p52 = por %p50, %p51
      %s53 = ssub.s32 %s19, %s26
      %p54 = scmp.eq.s32.totalorder %s53, 0
      %s56 = sadd.s32 %s55, 1
      %s57 = scalar_select %p54, %s55, %s56
      %p60 = pneg %p54
      %p61 = scmp.eq.s32.totalorder %s19, 1
      %p62 = por %p60, %p61
      %p63 = scmp.ne.s32.totalorder %s55, %s58
      %p64 = scmp.eq.s32.totalorder %s19, 0
      %p65 = por %p63, %p64
      %p66 = scmp.ne.s32.totalorder %s55, %s58
      %p67 = scmp.eq.s32.totalorder %s24, 1
      %p68 = por %p66, %p67
      %p69 = scmp.ne.s32.totalorder %s58, %s59
      %p70 = scmp.eq.s32.totalorder %s24, 0
      %p71 = por %p69, %p70
      %p72 = scmp.ne.s32.totalorder %s58, %s59
      %p73 = scmp.eq.s32.totalorder %s25, 1
      %p74 = por %p72, %p73
      %p76 = scmp.ne.s32.totalorder %s59, %s75
      %p77 = scmp.eq.s32.totalorder %s25, 0
      %p78 = por %p76, %p77
      %s79 = ssub.s32 %s19, %s26
      %p80 = scmp.eq.s32.totalorder %s79, 0
      %s82 = sadd.s32 %s81, 1
      %s83 = scalar_select %p80, %s81, %s82
      %p86 = pneg %p80
      %p87 = scmp.eq.s32.totalorder %s19, 1
      %p88 = por %p86, %p87
      %p89 = scmp.ne.s32.totalorder %s81, %s84
      %p90 = scmp.eq.s32.totalorder %s19, 0
      %p91 = por %p89, %p90
      %p92 = scmp.ne.s32.totalorder %s81, %s84
      %p93 = scmp.eq.s32.totalorder %s24, 1
      %p94 = por %p92, %p93
      %p95 = scmp.ne.s32.totalorder %s84, %s85
      %p96 = scmp.eq.s32.totalorder %s24, 0
      %p97 = por %p95, %p96
      %p98 = scmp.ne.s32.totalorder %s84, %s85
      %p99 = scmp.eq.s32.totalorder %s25, 1
      %p100 = por %p98, %p99
      %p102 = scmp.ne.s32.totalorder %s85, %s101
      %p103 = scmp.eq.s32.totalorder %s25, 0
      %p104 = por %p102, %p103
      %s105 = ssub.s32 %s19, %s26
      %p106 = scmp.eq.s32.totalorder %s105, 0
      %s108 = sadd.s32 %s107, 1
      %s109 = scalar_select %p106, %s107, %s108
      %p112 = pneg %p106
      %p113 = scmp.eq.s32.totalorder %s19, 1
      %p114 = por %p112, %p113
      %p115 = scmp.ne.s32.totalorder %s107, %s110
      %p116 = scmp.eq.s32.totalorder %s19, 0
      %p117 = por %p115, %p116
      %p118 = scmp.ne.s32.totalorder %s107, %s110
      %p119 = scmp.eq.s32.totalorder %s24, 1
      %p120 = por %p118, %p119
      %p121 = scmp.ne.s32.totalorder %s110, %s111
      %p122 = scmp.eq.s32.totalorder %s24, 0
      %p123 = por %p121, %p122
      %p124 = scmp.ne.s32.totalorder %s110, %s111
      %p125 = scmp.eq.s32.totalorder %s25, 1
      %p126 = por %p124, %p125
      %p128 = scmp.ne.s32.totalorder %s111, %s127
      %p129 = scmp.eq.s32.totalorder %s25, 0
      %p130 = por %p128, %p129
      %s131 = ssub.s32 %s19, %s26
      %p132 = scmp.eq.s32.totalorder %s131, 0
      %s134 = sadd.s32 %s133, 1
      %s135 = scalar_select %p132, %s133, %s134
      %p138 = pneg %p132
      %p139 = scmp.eq.s32.totalorder %s19, 1
      %p140 = por %p138, %p139
      %p141 = scmp.ne.s32.totalorder %s133, %s136
      %p142 = scmp.eq.s32.totalorder %s19, 0
      %p143 = por %p141, %p142
      %p144 = scmp.ne.s32.totalorder %s133, %s136
      %p145 = scmp.eq.s32.totalorder %s24, 1
      %p146 = por %p144, %p145
      %p147 = scmp.ne.s32.totalorder %s136, %s137
      %p148 = scmp.eq.s32.totalorder %s24, 0
      %p149 = por %p147, %p148
      %p150 = scmp.ne.s32.totalorder %s136, %s137
      %p151 = scmp.eq.s32.totalorder %s25, 1
      %p152 = por %p150, %p151
      %p154 = scmp.ne.s32.totalorder %s137, %s153
      %p155 = scmp.eq.s32.totalorder %s25, 0
      %p156 = por %p154, %p155
      %s157 = ssub.s32 %s19, %s26
      %p158 = scmp.eq.s32.totalorder %s157, 0
      %s160 = sadd.s32 %s159, 1
      %s161 = scalar_select %p158, %s159, %s160
      %p164 = pneg %p158
      %p165 = scmp.eq.s32.totalorder %s19, 1
      %p166 = por %p164, %p165
      %p167 = scmp.ne.s32.totalorder %s159, %s162
      %p168 = scmp.eq.s32.totalorder %s19, 0
      %p169 = por %p167, %p168
      %p170 = scmp.ne.s32.totalorder %s159, %s162
      %p171 = scmp.eq.s32.totalorder %s24, 1
      %p172 = por %p170, %p171
      %p173 = scmp.ne.s32.totalorder %s162, %s163
      %p174 = scmp.eq.s32.totalorder %s24, 0
      %p175 = por %p173, %p174
      %p176 = scmp.ne.s32.totalorder %s162, %s163
      %p177 = scmp.eq.s32.totalorder %s25, 1
      %p178 = por %p176, %p177
      %p180 = scmp.ne.s32.totalorder %s163, %s179
      %p181 = scmp.eq.s32.totalorder %s25, 0
      %p182 = por %p180, %p181
      %s183 = ssub.s32 %s19, %s26
      %p184 = scmp.eq.s32.totalorder %s183, 0
      %s186 = sadd.s32 %s185, 1
      %s187 = scalar_select %p184, %s185, %s186
      %p190 = pneg %p184
      %p191 = scmp.eq.s32.totalorder %s19, 1
      %p192 = por %p190, %p191
      %p193 = scmp.ne.s32.totalorder %s185, %s188
      %p194 = scmp.eq.s32.totalorder %s19, 0
      %p195 = por %p193, %p194
      %p196 = scmp.ne.s32.totalorder %s185, %s188
      %p197 = scmp.eq.s32.totalorder %s24, 1
      %p198 = por %p196, %p197
      %p199 = scmp.ne.s32.totalorder %s188, %s189
      %p200 = scmp.eq.s32.totalorder %s24, 0
      %p201 = por %p199, %p200
      %p202 = scmp.ne.s32.totalorder %s188, %s189
      %p203 = scmp.eq.s32.totalorder %s25, 1
      %p204 = por %p202, %p203
      %p206 = scmp.ne.s32.totalorder %s189, %s205
      %p207 = scmp.eq.s32.totalorder %s25, 0
      %p208 = por %p206, %p207
      %p209 = scmp.le.s32.totalorder 1, %s19
      %p210 = scmp.lt.s32.totalorder %s19, 3
      %p211 = pnand %p209, %p210
      %p212 = pneg %p211
      // Predicated region
      $region9: #{ssd_multibox_loss.1} parent=5 // pred_check
        _
      $region10: #{ssd_multibox_loss.1} parent=5 // pred_check_branch
        %214 = sbr.rel (%p211) target = $region12
      $region11: #{ssd_multibox_loss.1} parent=5 // pred_region
        %s215 = ssub.s32 %s19, 1
      $region12: #{ssd_multibox_loss.1} parent=5 // pred_fallthru
        _
      %p216 = scmp.lt.s32.totalorder %s19, 2
      // Predicated region
      $region13: #{ssd_multibox_loss.1} parent=5 // pred_check
        %p217 = pneg %p216
      $region14: #{ssd_multibox_loss.1} parent=5 // pred_check_branch
        %219 = sbr.rel (%p217) target = $region16
      $region15: #{ssd_multibox_loss.1} parent=5 // pred_region
        // Predicated region
        $region17: #{ssd_multibox_loss.1} parent=15 // pred_check
          %p220 = pneg %p39
        $region18: #{ssd_multibox_loss.1} parent=15 // pred_check_branch
          %222 = sbr.rel (%p220) target = $region20
        $region19: #{ssd_multibox_loss.1} parent=15 // pred_region
          %s223 = sand.u32 %s29, 1
          %s224 = scalar_lea.sflag [#allocation4], %s223
          %s225 = sand.u32 %s29, 1
          %s226 = smul.addr %s225, 16
          %s227 = scalar_lea.vmem [#allocation3], %s226
          %s229 = ssub.s32 256, 256
          %230 = vsyncadd %s224, %s229
          %s231 = smul.addr %s19, 2
          %s232 = smul.addr %s231, 128
          %s233 = scalar_lea.hbm %s0, %s232
          %s235 = sshll.u32 %s227, 4
          %s236 = int_to_ptr.vmem [resolvable:$true] %s235
          %238 = dma.hbm_to_vmem [thread:$0]  %s233, 256, %s236, %s224
        $region20: #{ssd_multibox_loss.1} parent=15 // pred_fallthru
          _
        // Predicated region
        $region21: #{ssd_multibox_loss.1} parent=15 // pred_check
          %p239 = pneg %p65
        $region22: #{ssd_multibox_loss.1} parent=15 // pred_check_branch
          %241 = sbr.rel (%p239) target = $region24
        $region23: #{ssd_multibox_loss.1} parent=15 // pred_region
          %p242 = scmp.lt.s32.totalorder %s19, 1
          %s243 = scalar_select %p242, %s19, 1
          %s244 = smul.addr %s243, 2
          %s245 = scalar_lea.vmem %s1, %s244
        $region24: #{ssd_multibox_loss.1} parent=15 // pred_fallthru
          _
        // Predicated region
        $region25: #{ssd_multibox_loss.1} parent=15 // pred_check
          %p246 = pneg %p91
        $region26: #{ssd_multibox_loss.1} parent=15 // pred_check_branch
          %248 = sbr.rel (%p246) target = $region28
        $region27: #{ssd_multibox_loss.1} parent=15 // pred_region
          %p249 = scmp.lt.s32.totalorder %s19, 1
          %s250 = scalar_select %p249, %s19, 1
          %s251 = smul.addr %s250, 2
          %s252 = smul.addr %s251, 4
          %s253 = scalar_lea.vmem %s2, %s252
        $region28: #{ssd_multibox_loss.1} parent=15 // pred_fallthru
          _
        // Predicated region
        $region29: #{ssd_multibox_loss.1} parent=15 // pred_check
          %p254 = pneg %p117
        $region30: #{ssd_multibox_loss.1} parent=15 // pred_check_branch
          %256 = sbr.rel (%p254) target = $region32
        $region31: #{ssd_multibox_loss.1} parent=15 // pred_region
          %s257 = sand.u32 %s107, 1
          %s258 = scalar_lea.sflag [#allocation6], %s257
          %s259 = sand.u32 %s107, 1
          %s260 = smul.addr %s259, 8
          %s261 = scalar_lea.vmem [#allocation5], %s260
          %s263 = ssub.s32 128, 128
          %264 = vsyncadd %s258, %s263
          %s265 = smul.addr %s19, 2
          %s266 = smul.addr %s265, 64
          %s267 = scalar_lea.hbm %s3, %s266
          %s269 = sshll.u32 %s261, 4
          %s270 = int_to_ptr.vmem [resolvable:$true] %s269
          %272 = dma.hbm_to_vmem [thread:$0]  %s267, 128, %s270, %s258
        $region32: #{ssd_multibox_loss.1} parent=15 // pred_fallthru
          _
      $region16: #{ssd_multibox_loss.1} parent=5 // pred_fallthru
        _
      %p273 = scmp.le.s32.totalorder 1, %s19
      %p274 = scmp.lt.s32.totalorder %s19, 3
      %p275 = pnand %p273, %p274
      %p276 = pneg %p275
      // Predicated region
      $region33: #{ssd_multibox_loss.1} parent=5 // pred_check
        _
      $region34: #{ssd_multibox_loss.1} parent=5 // pred_check_branch
        %278 = sbr.rel (%p275) target = $region36
      $region35: #{ssd_multibox_loss.1} parent=5 // pred_region
        %s279 = ssub.s32 %s19, 1
        %s280 = sand.u32 %s32, 1
        %s281 = scalar_lea.sflag [#allocation4], %s280
        %s282 = sand.u32 %s32, 1
        %s283 = smul.addr %s282, 16
        %s284 = scalar_lea.vmem [#allocation3], %s283
        // Predicated region
        $region37: #{ssd_multibox_loss.1} parent=35 // pred_check
          %p285 = pneg %p45
        $region38: #{ssd_multibox_loss.1} parent=35 // pred_check_branch
          %287 = sbr.rel (%p285) target = $region40
        $region39: #{ssd_multibox_loss.1} parent=35 // pred_region
          %288 = dma.done %s281, 256
        $region40: #{ssd_multibox_loss.1} parent=35 // pred_fallthru
          _
        %s289 = sand.u32 %s110, 1
        %s290 = scalar_lea.sflag [#allocation6], %s289
        %s291 = sand.u32 %s110, 1
        %s292 = smul.addr %s291, 8
        %s293 = scalar_lea.vmem [#allocation5], %s292
        // Predicated region
        $region41: #{ssd_multibox_loss.1} parent=35 // pred_check
          %p294 = pneg %p123
        $region42: #{ssd_multibox_loss.1} parent=35 // pred_check_branch
          %296 = sbr.rel (%p294) target = $region44
        $region43: #{ssd_multibox_loss.1} parent=35 // pred_region
          %297 = dma.done %s290, 128
        $region44: #{ssd_multibox_loss.1} parent=35 // pred_fallthru
          _
        %s298 = sand.u32 %s32, 1
        %s299 = scalar_lea.sflag [#allocation4], %s298
        %s300 = sand.u32 %s32, 1
        %s301 = smul.addr %s300, 16
        %s302 = scalar_lea.vmem [#allocation3], %s301
        %p303 = pneg %p45
        %p304 = pneg %p42
        %p305 = scmp.lt.s32.totalorder %s24, 1
        %s306 = scalar_select %p305, %s24, 1
        %s307 = smul.addr %s306, 2
        %s308 = scalar_lea.vmem %s1, %s307
        %p309 = pneg %p71
        %p310 = pneg %p68
        %p311 = scmp.lt.s32.totalorder %s24, 1
        %s312 = scalar_select %p311, %s24, 1
        %s313 = smul.addr %s312, 2
        %s314 = smul.addr %s313, 4
        %s315 = scalar_lea.vmem %s2, %s314
        %p316 = pneg %p97
        %p317 = pneg %p94
        %s318 = sand.u32 %s110, 1
        %s319 = scalar_lea.sflag [#allocation6], %s318
        %s320 = sand.u32 %s110, 1
        %s321 = smul.addr %s320, 8
        %s322 = scalar_lea.vmem [#allocation5], %s321
        %p323 = pneg %p123
        %p324 = pneg %p120
        %p325 = pneg %p149
        %p326 = pneg %p146
        %p327 = scmp.lt.s32.totalorder %s24, 1
        %s328 = scalar_select %p327, %s24, 1
        %s329 = scalar_lea.vmem %s4, %s328
        %p330 = pneg %p175
        %p331 = pneg %p172
        %p332 = scmp.lt.s32.totalorder %s24, 1
        %s333 = scalar_select %p332, %s24, 1
        %s334 = scalar_lea.vmem %s5, %s333
        %p335 = pneg %p201
        %p336 = pneg %p198
        %p337 = scmp.lt.s32.totalorder %s24, 1
        %s338 = scalar_select %p337, %s24, 1
        %s339 = scalar_lea.vmem %s6, %s338
        %p340 = scmp.lt.s32.totalorder %s24, 1
        %s341 = scalar_select %p340, %s24, 1
        %s342 = smul.addr %s341, 2
        %s343 = scalar_lea.vmem %s1, %s342
        %p344 = scmp.lt.s32.totalorder %s24, 1
        %s345 = scalar_select %p344, %s24, 1
        %s346 = smul.addr %s345, 2
        %s347 = smul.addr %s346, 4
        %s348 = scalar_lea.vmem %s2, %s347
        %p349 = scmp.lt.s32.totalorder %s24, 1
        %s350 = scalar_select %p349, %s24, 1
        %s351 = scalar_lea.vmem %s4, %s350
        %p352 = scmp.lt.s32.totalorder %s24, 1
        %s353 = scalar_select %p352, %s24, 1
        %s354 = scalar_lea.vmem %s5, %s353
        %p355 = scmp.lt.s32.totalorder %s24, 1
        %s356 = scalar_select %p355, %s24, 1
        %s357 = scalar_lea.vmem %s6, %s356
        %v358 = vld [vmem:[%s284] sm:$0xff]
        %v359 = vld [vmem:[%s284 + $0x8] sm:$0xff]
        %v360 = vld [vmem:[%s343] sm:$0x3]
        %v361 = vld [vmem:[%s348] sm:$0xff]
        %v362 = vld [vmem:[%s293] sm:$0xff]
        %vm363 = vcmp.gt.s32.totalorder %v360, 0
        %v364 = vsel %vm363, 1, 0
        %v365 = vcvt.s32.f32 %v364
        %vm366 = vcmp.ne.s32.totalorder %v360, 4294967295
        %v367 = vsel %vm366, 1, 0
        %v368 = vcvt.s32.f32 %v367
        %v369 = vlaneseq
        %v370 = vshrl.u32 %v369, 7
        %vm371 = vcmp.gt.s32.totalorder %v360, 0
        %v372 = vsel %vm371, %v360, 0
        %vm373 = vcmp.lt.s32.totalorder %v372, 7
        %v374 = vsel %vm373, %v372, 7
        %v375 = vlaneseq
        %v376 = vshrl.u32 %v375, 7
        %v377 = vsub.s32 0, %v376
        %v378 = vrot.slane %v374, %v377
        %v379 = vlaneseq
        %v380 = vshrl.u32 %v379, 7
        %v381 = vsub.s32 1, %v380
        %v382 = vrot.slane %v374, %v381
        %vm383 = vcmp.eq.s32.totalorder %v370, %v378
        %vm384 = vcmp.eq.s32.totalorder %v370, %v382
        %v385 = vsel %vm383, 1, 0
        %v386 = vsel %vm384, 1, 0
        %v387 = vcvt.s32.f32 %v385
        %v388 = vcvt.s32.f32 %v386
        %v389 = vmul.f32 %v358, %v387
        %v390 = vmul.f32 %v359, %v388
        %v391 = vrot.slane %v389, 4
        %v392 = vadd.f32 %v389, %v391
        %v393 = vrot.slane %v392, 2
        %v394 = vadd.f32 %v392, %v393
        %v395 = vrot.slane %v394, 1
        %v396 = vadd.f32 %v394, %v395
        %v397 = vrot.slane %v390, 4
        %v398 = vadd.f32 %v390, %v397
        %v399 = vrot.slane %v398, 2
        %v400 = vadd.f32 %v398, %v399
        %v401 = vrot.slane %v400, 1
        %v402 = vadd.f32 %v400, %v401
        %v403 = vrot.slane %v358, 4
        %v404 = vmax.f32 %v358, %v403
        %v405 = vrot.slane %v404, 2
        %v406 = vmax.f32 %v404, %v405
        %v407 = vrot.slane %v406, 1
        %v408 = vmax.f32 %v406, %v407
        %v409 = vrot.slane %v359, 4
        %v410 = vmax.f32 %v359, %v409
        %v411 = vrot.slane %v410, 2
        %v412 = vmax.f32 %v410, %v411
        %v413 = vrot.slane %v412, 1
        %v414 = vmax.f32 %v412, %v413
        %v415 = vsub.f32 %v358, %v408
        %v416 = vsub.f32 %v359, %v414
        %v417 = vmul.f32 %v415, 1.442695
        %v418 = vpow.pop %v417
        %v419 = vmul.f32 %v416, 1.442695
        %v420 = vpow.pop %v419
        %v421 = vrot.slane %v418, 4
        %v422 = vadd.f32 %v418, %v421
        %v423 = vrot.slane %v422, 2
        %v424 = vadd.f32 %v422, %v423
        %v425 = vrot.slane %v424, 1
        %v426 = vadd.f32 %v424, %v425
        %v427 = vrot.slane %v420, 4
        %v428 = vadd.f32 %v420, %v427
        %v429 = vrot.slane %v428, 2
        %v430 = vadd.f32 %v428, %v429
        %v431 = vrot.slane %v430, 1
        %v432 = vadd.f32 %v430, %v431
        %v433 = vlog2.pop %v426
        %v434 = vmul.f32 %v433, 0.6931472
        %v435 = vlog2.pop %v432
        %v436 = vmul.f32 %v435, 0.6931472
        %v437 = vadd.f32 %v434, %v408
        %v438 = vadd.f32 %v436, %v414
        %v439 = vsub.f32 %v437, %v396
        %v440 = vsub.f32 %v438, %v402
        %v441 = vsub.f32 %v361, %v362
        %v442 = vand.u32 2147483647, %v441
        %vm443 = vcmp.lt.f32.partialorder %v442, 1.0
        %v444 = vmul.f32 %v441, 0.5
        %v445 = vmul.f32 %v444, %v441
        %v446 = vsub.f32 %v442, 0.5
        %v447 = vsel %vm443, %v445, %v446
        %v449 = vcombine.high %v447, %v447
        %vm451 = vcmask 1043456
        %v452 = vsel %vm451, %v447, 0.0
        %v453 = vrot.slane %v452, 4
        %v454 = vadd.f32 %v452, %v453
        %v455 = vrot.slane %v454, 2
        %v456 = vadd.f32 %v454, %v455
        %v457 = vrot.slane %v456, 1
        %v458 = vadd.f32 %v456, %v457
        %v459 = vsel %vm451, %v449, 0.0
        %v460 = vrot.slane %v459, 4
        %v461 = vadd.f32 %v459, %v460
        %v462 = vrot.slane %v461, 2
        %v463 = vadd.f32 %v461, %v462
        %v464 = vrot.slane %v463, 1
        %v465 = vadd.f32 %v463, %v464
        %v467 = vlaneseq
        %v468 = vshrl.u32 %v467, 7
        %v469 = vsub.s32 0, %v468
        %v470 = vrot.slane %v365, %v469
        %v471 = vlaneseq
        %v472 = vshrl.u32 %v471, 7
        %v473 = vsub.s32 1, %v472
        %v474 = vrot.slane %v365, %v473
        %vm477 = vcmask 1040384
        %v478 = vsel %vm477, %v470, 0.0
        %v479 = vsel %vm477, %v474, 0.0
        %v480 = vadd.f32 %v478, %v479
        %481 = vadd.xlane.f32.xlu0 %v480
        %v482 = vpop.xlane.xlu0 %481
        %v483 = vrot.slane %v482, 4
        %v484 = vadd.f32 %v482, %v483
        %v485 = vrot.slane %v484, 2
        %v486 = vadd.f32 %v484, %v485
        %v487 = vrot.slane %v486, 1
        %v488 = vadd.f32 %v486, %v487
        %s489 = vtos %v488
        %v490 = vstv %s489
        %v491 = vmul.f32 %v458, %v470
        %v492 = vmul.f32 %v465, %v474
        %v493 = vsel %vm477, %v491, 0.0
        %v494 = vsel %vm477, %v492, 0.0
        %v495 = vadd.f32 %v493, %v494
        %496 = vadd.xlane.f32.xlu0 %v495
        %v497 = vpop.xlane.xlu0 %496
        %v498 = vrot.slane %v497, 4
        %v499 = vadd.f32 %v497, %v498
        %v500 = vrot.slane %v499, 2
        %v501 = vadd.f32 %v499, %v500
        %v502 = vrot.slane %v501, 1
        %v503 = vadd.f32 %v501, %v502
        %s504 = vtos %v503
        %v505 = vstv %s504
        %vm506 = vcmask 0
        %507 = vst.msk [vmem:[%s351] sm:$0x1] %vm506, %v505
        %508 = vst.msk [vmem:[%s357] sm:$0x1] %vm506, %v490
        %v509 = vmul.f32 %v490, 3.0
        %v510 = vmax.f32 %v509, 1.0
        %v511 = vmin.f32 %v510, 255.0
        %v512 = vsub.f32 1.0, %v365
        %v514 = vlaneseq
        %v515 = vshrl.u32 %v514, 7
        %v516 = vsub.s32 0, %v515
        %v517 = vrot.slane %v512, %v516
        %v518 = vlaneseq
        %v519 = vshrl.u32 %v518, 7
        %v520 = vsub.s32 1, %v519
        %v521 = vrot.slane %v512, %v520
        %v524 = vmul.f32 %v439, %v517
        %v525 = vmul.f32 %v440, %v521
        %v526 = vlaneseq
        %v527 = vand.u32 %v526, 127
        %v528 = vadd.s32 %v527, 128
        %v529 = vlaneseq
        %v530 = vshrl.u32 %v529, 7
        %v531 = vsub.s32 0, %v530
        %v532 = vrot.slane %v524, %v531
        %v533 = vlaneseq
        %v534 = vshrl.u32 %v533, 7
        %v535 = vsub.s32 0, %v534
        %v536 = vrot.slane %v525, %v535
        %537 = vxpose.xlu0.b32.start [1/16] %v532, 128
        %538 = vxpose.xlu0.b32.cont [2/16] 0.0, 128
        %539 = vxpose.xlu0.b32.cont [3/16] 0.0, 128
        %540 = vxpose.xlu0.b32.cont [4/16] 0.0, 128
        %541 = vxpose.xlu0.b32.cont [5/16] 0.0, 128
        %542 = vxpose.xlu0.b32.cont [6/16] 0.0, 128
        %543 = vxpose.xlu0.b32.cont [7/16] 0.0, 128
        %544 = vxpose.xlu0.b32.cont [8/16] 0.0, 128
        %545 = vxpose.xlu0.b32.cont [9/16] 0.0, 128
        %546 = vxpose.xlu0.b32.cont [10/16] 0.0, 128
        %547 = vxpose.xlu0.b32.cont [11/16] 0.0, 128
        %548 = vxpose.xlu0.b32.cont [12/16] 0.0, 128
        %549 = vxpose.xlu0.b32.cont [13/16] 0.0, 128
        %550 = vxpose.xlu0.b32.cont [14/16] 0.0, 128
        %551 = vxpose.xlu0.b32.cont [15/16] 0.0, 128
        %552 = vxpose.xlu0.b32.end [16/16] 0.0, 128
        %v553 = vpop.trf.xlu0
        %v554 = vpop.trf.xlu0
        %v555 = vpop.trf.xlu0
        %v556 = vpop.trf.xlu0
        %v557 = vpop.trf.xlu0
        %v558 = vpop.trf.xlu0
        %v559 = vpop.trf.xlu0
        %v560 = vpop.trf.xlu0
        %v561 = vpop.trf.xlu0
        %v562 = vpop.trf.xlu0
        %v563 = vpop.trf.xlu0
        %v564 = vpop.trf.xlu0
        %v565 = vpop.trf.xlu0
        %v566 = vpop.trf.xlu0
        %v567 = vpop.trf.xlu0
        %v568 = vpop.trf.xlu0
        %569 = vxpose.xlu0.b32.start [1/16] %v536, 128
        %570 = vxpose.xlu0.b32.cont [2/16] 0.0, 128
        %571 = vxpose.xlu0.b32.cont [3/16] 0.0, 128
        %572 = vxpose.xlu0.b32.cont [4/16] 0.0, 128
        %573 = vxpose.xlu0.b32.cont [5/16] 0.0, 128
        %574 = vxpose.xlu0.b32.cont [6/16] 0.0, 128
        %575 = vxpose.xlu0.b32.cont [7/16] 0.0, 128
        %576 = vxpose.xlu0.b32.cont [8/16] 0.0, 128
        %577 = vxpose.xlu0.b32.cont [9/16] 0.0, 128
        %578 = vxpose.xlu0.b32.cont [10/16] 0.0, 128
        %579 = vxpose.xlu0.b32.cont [11/16] 0.0, 128
        %580 = vxpose.xlu0.b32.cont [12/16] 0.0, 128
        %581 = vxpose.xlu0.b32.cont [13/16] 0.0, 128
        %582 = vxpose.xlu0.b32.cont [14/16] 0.0, 128
        %583 = vxpose.xlu0.b32.cont [15/16] 0.0, 128
        %584 = vxpose.xlu0.b32.end [16/16] 0.0, 128
        %v585 = vpop.trf.xlu0
        %v586 = vpop.trf.xlu0
        %v587 = vpop.trf.xlu0
        %v588 = vpop.trf.xlu0
        %v589 = vpop.trf.xlu0
        %v590 = vpop.trf.xlu0
        %v591 = vpop.trf.xlu0
        %v592 = vpop.trf.xlu0
        %v593 = vpop.trf.xlu0
        %v594 = vpop.trf.xlu0
        %v595 = vpop.trf.xlu0
        %v596 = vpop.trf.xlu0
        %v597 = vpop.trf.xlu0
        %v598 = vpop.trf.xlu0
        %v599 = vpop.trf.xlu0
        %v600 = vpop.trf.xlu0
        %vm601 = vcmask 7168
        %602 = vst.msk [vmem:[#allocation2] sm:$0xff] %vm601, %v553
        %603 = vst.msk [vmem:[#allocation2 + $0x8] sm:$0xff] %vm601, %v554
        %604 = vst.msk [vmem:[#allocation2 + $0x10] sm:$0xff] %vm601, %v555
        %605 = vst.msk [vmem:[#allocation2 + $0x18] sm:$0xff] %vm601, %v556
        %606 = vst.msk [vmem:[#allocation2 + $0x20] sm:$0xff] %vm601, %v557
        %607 = vst.msk [vmem:[#allocation2 + $0x28] sm:$0xff] %vm601, %v558
        %608 = vst.msk [vmem:[#allocation2 + $0x30] sm:$0xff] %vm601, %v559
        %609 = vst.msk [vmem:[#allocation2 + $0x38] sm:$0xff] %vm601, %v560
        %610 = vst.msk [vmem:[#allocation2 + $0x40] sm:$0xff] %vm601, %v561
        %611 = vst.msk [vmem:[#allocation2 + $0x48] sm:$0xff] %vm601, %v562
        %612 = vst.msk [vmem:[#allocation2 + $0x50] sm:$0xff] %vm601, %v563
        %613 = vst.msk [vmem:[#allocation2 + $0x58] sm:$0xff] %vm601, %v564
        %614 = vst.msk [vmem:[#allocation2 + $0x60] sm:$0xff] %vm601, %v565
        %615 = vst.msk [vmem:[#allocation2 + $0x68] sm:$0xff] %vm601, %v566
        %616 = vst.msk [vmem:[#allocation2 + $0x70] sm:$0xff] %vm601, %v567
        %617 = vst.msk [vmem:[#allocation2 + $0x78] sm:$0xff] %vm601, %v568
        %618 = vst.msk [vmem:[#allocation2 + $0x80] sm:$0xff] %vm601, %v585
        %619 = vst.msk [vmem:[#allocation2 + $0x88] sm:$0xff] %vm601, %v586
        %620 = vst.msk [vmem:[#allocation2 + $0x90] sm:$0xff] %vm601, %v587
        %621 = vst.msk [vmem:[#allocation2 + $0x98] sm:$0xff] %vm601, %v588
        %622 = vst.msk [vmem:[#allocation2 + $0xa0] sm:$0xff] %vm601, %v589
        %623 = vst.msk [vmem:[#allocation2 + $0xa8] sm:$0xff] %vm601, %v590
        %624 = vst.msk [vmem:[#allocation2 + $0xb0] sm:$0xff] %vm601, %v591
        %625 = vst.msk [vmem:[#allocation2 + $0xb8] sm:$0xff] %vm601, %v592
        %626 = vst.msk [vmem:[#allocation2 + $0xc0] sm:$0xff] %vm601, %v593
        %627 = vst.msk [vmem:[#allocation2 + $0xc8] sm:$0xff] %vm601, %v594
        %628 = vst.msk [vmem:[#allocation2 + $0xd0] sm:$0xff] %vm601, %v595
        %629 = vst.msk [vmem:[#allocation2 + $0xd8] sm:$0xff] %vm601, %v596
        %630 = vst.msk [vmem:[#allocation2 + $0xe0] sm:$0xff] %vm601, %v597
        %631 = vst.msk [vmem:[#allocation2 + $0xe8] sm:$0xff] %vm601, %v598
        %632 = vst.msk [vmem:[#allocation2 + $0xf0] sm:$0xff] %vm601, %v599
        %633 = vst.msk [vmem:[#allocation2 + $0xf8] sm:$0xff] %vm601, %v600
        %v634 = vld [vmem:[#allocation2] sm:$0xff]
        %v635 = vld [vmem:[#allocation2 + $0x8] sm:$0xff]
        %v636 = vld [vmem:[#allocation2 + $0x10] sm:$0xff]
        %v637 = vld [vmem:[#allocation2 + $0x18] sm:$0xff]
        %v638 = vld [vmem:[#allocation2 + $0x20] sm:$0xff]
        %v639 = vld [vmem:[#allocation2 + $0x28] sm:$0xff]
        %v640 = vld [vmem:[#allocation2 + $0x30] sm:$0xff]
        %v641 = vld [vmem:[#allocation2 + $0x38] sm:$0xff]
        %v642 = vld [vmem:[#allocation2 + $0x40] sm:$0xff]
        %v643 = vld [vmem:[#allocation2 + $0x48] sm:$0xff]
        %v644 = vld [vmem:[#allocation2 + $0x50] sm:$0xff]
        %v645 = vld [vmem:[#allocation2 + $0x58] sm:$0xff]
        %v646 = vld [vmem:[#allocation2 + $0x60] sm:$0xff]
        %v647 = vld [vmem:[#allocation2 + $0x68] sm:$0xff]
        %v648 = vld [vmem:[#allocation2 + $0x70] sm:$0xff]
        %v649 = vld [vmem:[#allocation2 + $0x78] sm:$0xff]
        %v650 = vld [vmem:[#allocation2 + $0x80] sm:$0xff]
        %v651 = vld [vmem:[#allocation2 + $0x88] sm:$0xff]
        %v652 = vld [vmem:[#allocation2 + $0x90] sm:$0xff]
        %v653 = vld [vmem:[#allocation2 + $0x98] sm:$0xff]
        %v654 = vld [vmem:[#allocation2 + $0xa0] sm:$0xff]
        %v655 = vld [vmem:[#allocation2 + $0xa8] sm:$0xff]
        %v656 = vld [vmem:[#allocation2 + $0xb0] sm:$0xff]
        %v657 = vld [vmem:[#allocation2 + $0xb8] sm:$0xff]
        %v658 = vld [vmem:[#allocation2 + $0xc0] sm:$0xff]
        %v659 = vld [vmem:[#allocation2 + $0xc8] sm:$0xff]
        %v660 = vld [vmem:[#allocation2 + $0xd0] sm:$0xff]
        %v661 = vld [vmem:[#allocation2 + $0xd8] sm:$0xff]
        %v662 = vld [vmem:[#allocation2 + $0xe0] sm:$0xff]
        %v663 = vld [vmem:[#allocation2 + $0xe8] sm:$0xff]
        %v664 = vld [vmem:[#allocation2 + $0xf0] sm:$0xff]
        %v665 = vld [vmem:[#allocation2 + $0xf8] sm:$0xff]
        %v666 = vadd.s32 %v370, 8
        %v667 = vadd.s32 %v370, 16
        %v668 = vadd.s32 %v370, 24
        %v669 = vadd.s32 %v370, 32
        %v670 = vadd.s32 %v370, 40
        %v671 = vadd.s32 %v370, 48
        %v672 = vadd.s32 %v370, 56
        %v673 = vadd.s32 %v370, 64
        %v674 = vadd.s32 %v370, 72
        %v675 = vadd.s32 %v370, 80
        %v676 = vadd.s32 %v370, 88
        %v677 = vadd.s32 %v370, 96
        %v678 = vadd.s32 %v370, 104
        %v679 = vadd.s32 %v370, 112
        %v680 = vadd.s32 %v370, 120
        %v681 = vadd.s32 %v370, 128
        %v682 = vadd.s32 %v370, 136
        %v683 = vadd.s32 %v370, 144
        %v684 = vadd.s32 %v370, 152
        %v685 = vadd.s32 %v370, 160
        %v686 = vadd.s32 %v370, 168
        %v687 = vadd.s32 %v370, 176
        %v688 = vadd.s32 %v370, 184
        %v689 = vadd.s32 %v370, 192
        %v690 = vadd.s32 %v370, 200
        %v691 = vadd.s32 %v370, 208
        %v692 = vadd.s32 %v370, 216
        %v693 = vadd.s32 %v370, 224
        %v694 = vadd.s32 %v370, 232
        %v695 = vadd.s32 %v370, 240
        %v696 = vadd.s32 %v370, 248
        %v697 = vstv 0
        %v698 = vadd.s32 %v697, %v370
        %v699 = vadd.s32 %v697, %v666
        %v700 = vadd.s32 %v697, %v667
        %v701 = vadd.s32 %v697, %v668
        %v702 = vadd.s32 %v697, %v669
        %v703 = vadd.s32 %v697, %v670
        %v704 = vadd.s32 %v697, %v671
        %v705 = vadd.s32 %v697, %v672
        %v706 = vadd.s32 %v697, %v673
        %v707 = vadd.s32 %v697, %v674
        %v708 = vadd.s32 %v697, %v675
        %v709 = vadd.s32 %v697, %v676
        %v710 = vadd.s32 %v697, %v677
        %v711 = vadd.s32 %v697, %v678
        %v712 = vadd.s32 %v697, %v679
        %v713 = vadd.s32 %v697, %v680
        %v714 = vadd.s32 %v697, %v681
        %v715 = vadd.s32 %v697, %v682
        %v716 = vadd.s32 %v697, %v683
        %v717 = vadd.s32 %v697, %v684
        %v718 = vadd.s32 %v697, %v685
        %v719 = vadd.s32 %v697, %v686
        %v720 = vadd.s32 %v697, %v687
        %v721 = vadd.s32 %v697, %v688
        %v722 = vadd.s32 %v697, %v689
        %v723 = vadd.s32 %v697, %v690
        %v724 = vadd.s32 %v697, %v691
        %v725 = vadd.s32 %v697, %v692
        %v726 = vadd.s32 %v697, %v693
        %v727 = vadd.s32 %v697, %v694
        %v728 = vadd.s32 %v697, %v695
        %v729 = vadd.s32 %v697, %v696
        %731 = vset.pattern.permute.xlu0 0
        %732 = vperm.xlu0 %731, %v634
        %v733 = vpop.permute.xlu0 %732
        %736 = vset.pattern.permute.xlu0 0
        %737 = vperm.xlu0 %736, %v635
        %v738 = vpop.permute.xlu0 %737
        %741 = vset.pattern.permute.xlu0 0
        %742 = vperm.xlu0 %741, %v636
        %v743 = vpop.permute.xlu0 %742
        %746 = vset.pattern.permute.xlu0 0
        %747 = vperm.xlu0 %746, %v637
        %v748 = vpop.permute.xlu0 %747
        %751 = vset.pattern.permute.xlu0 0
        %752 = vperm.xlu0 %751, %v638
        %v753 = vpop.permute.xlu0 %752
        %756 = vset.pattern.permute.xlu0 0
        %757 = vperm.xlu0 %756, %v639
        %v758 = vpop.permute.xlu0 %757
        %761 = vset.pattern.permute.xlu0 0
        %762 = vperm.xlu0 %761, %v640
        %v763 = vpop.permute.xlu0 %762
        %766 = vset.pattern.permute.xlu0 0
        %767 = vperm.xlu0 %766, %v641
        %v768 = vpop.permute.xlu0 %767
        %771 = vset.pattern.permute.xlu0 0
        %772 = vperm.xlu0 %771, %v642
        %v773 = vpop.permute.xlu0 %772
        %776 = vset.pattern.permute.xlu0 0
        %777 = vperm.xlu0 %776, %v643
        %v778 = vpop.permute.xlu0 %777
        %781 = vset.pattern.permute.xlu0 0
        %782 = vperm.xlu0 %781, %v644
        %v783 = vpop.permute.xlu0 %782
        %786 = vset.pattern.permute.xlu0 0
        %787 = vperm.xlu0 %786, %v645
        %v788 = vpop.permute.xlu0 %787
        %791 = vset.pattern.permute.xlu0 0
        %792 = vperm.xlu0 %791, %v646
        %v793 = vpop.permute.xlu0 %792
        %796 = vset.pattern.permute.xlu0 0
        %797 = vperm.xlu0 %796, %v647
        %v798 = vpop.permute.xlu0 %797
        %801 = vset.pattern.permute.xlu0 0
        %802 = vperm.xlu0 %801, %v648
        %v803 = vpop.permute.xlu0 %802
        %806 = vset.pattern.permute.xlu0 0
        %807 = vperm.xlu0 %806, %v649
        %v808 = vpop.permute.xlu0 %807
        %811 = vset.pattern.permute.xlu0 0
        %812 = vperm.xlu0 %811, %v650
        %v813 = vpop.permute.xlu0 %812
        %816 = vset.pattern.permute.xlu0 0
        %817 = vperm.xlu0 %816, %v651
        %v818 = vpop.permute.xlu0 %817
        %821 = vset.pattern.permute.xlu0 0
        %822 = vperm.xlu0 %821, %v652
        %v823 = vpop.permute.xlu0 %822
        %826 = vset.pattern.permute.xlu0 0
        %827 = vperm.xlu0 %826, %v653
        %v828 = vpop.permute.xlu0 %827
        %831 = vset.pattern.permute.xlu0 0
        %832 = vperm.xlu0 %831, %v654
        %v833 = vpop.permute.xlu0 %832
        %836 = vset.pattern.permute.xlu0 0
        %837 = vperm.xlu0 %836, %v655
        %v838 = vpop.permute.xlu0 %837
        %841 = vset.pattern.permute.xlu0 0
        %842 = vperm.xlu0 %841, %v656
        %v843 = vpop.permute.xlu0 %842
        %846 = vset.pattern.permute.xlu0 0
        %847 = vperm.xlu0 %846, %v657
        %v848 = vpop.permute.xlu0 %847
        %851 = vset.pattern.permute.xlu0 0
        %852 = vperm.xlu0 %851, %v658
        %v853 = vpop.permute.xlu0 %852
        %856 = vset.pattern.permute.xlu0 0
        %857 = vperm.xlu0 %856, %v659
        %v858 = vpop.permute.xlu0 %857
        %861 = vset.pattern.permute.xlu0 0
        %862 = vperm.xlu0 %861, %v660
        %v863 = vpop.permute.xlu0 %862
        %866 = vset.pattern.permute.xlu0 0
        %867 = vperm.xlu0 %866, %v661
        %v868 = vpop.permute.xlu0 %867
        %871 = vset.pattern.permute.xlu0 0
        %872 = vperm.xlu0 %871, %v662
        %v873 = vpop.permute.xlu0 %872
        %876 = vset.pattern.permute.xlu0 0
        %877 = vperm.xlu0 %876, %v663
        %v878 = vpop.permute.xlu0 %877
        %881 = vset.pattern.permute.xlu0 0
        %882 = vperm.xlu0 %881, %v664
        %v883 = vpop.permute.xlu0 %882
        %886 = vset.pattern.permute.xlu0 0
        %887 = vperm.xlu0 %886, %v665
        %v888 = vpop.permute.xlu0 %887
        %vm890 = vcmp.gt.f32.partialorder %v733, %v532
        %vm891 = vcmp.gt.f32.partialorder %v733, %v536
        %vm892 = vcmp.gt.f32.partialorder %v738, %v532
        %vm893 = vcmp.gt.f32.partialorder %v738, %v536
        %vm894 = vcmp.gt.f32.partialorder %v743, %v532
        %vm895 = vcmp.gt.f32.partialorder %v743, %v536
        %vm896 = vcmp.gt.f32.partialorder %v748, %v532
        %vm897 = vcmp.gt.f32.partialorder %v748, %v536
        %vm898 = vcmp.gt.f32.partialorder %v753, %v532
        %vm899 = vcmp.gt.f32.partialorder %v753, %v536
        %vm900 = vcmp.gt.f32.partialorder %v758, %v532
        %vm901 = vcmp.gt.f32.partialorder %v758, %v536
        %vm902 = vcmp.gt.f32.partialorder %v763, %v532
        %vm903 = vcmp.gt.f32.partialorder %v763, %v536
        %vm904 = vcmp.gt.f32.partialorder %v768, %v532
        %vm905 = vcmp.gt.f32.partialorder %v768, %v536
        %vm906 = vcmp.gt.f32.partialorder %v773, %v532
        %vm907 = vcmp.gt.f32.partialorder %v773, %v536
        %vm908 = vcmp.gt.f32.partialorder %v778, %v532
        %vm909 = vcmp.gt.f32.partialorder %v778, %v536
        %vm910 = vcmp.gt.f32.partialorder %v783, %v532
        %vm911 = vcmp.gt.f32.partialorder %v783, %v536
        %vm912 = vcmp.gt.f32.partialorder %v788, %v532
        %vm913 = vcmp.gt.f32.partialorder %v788, %v536
        %vm914 = vcmp.gt.f32.partialorder %v793, %v532
        %vm915 = vcmp.gt.f32.partialorder %v793, %v536
        %vm916 = vcmp.gt.f32.partialorder %v798, %v532
        %vm917 = vcmp.gt.f32.partialorder %v798, %v536
        %vm918 = vcmp.gt.f32.partialorder %v803, %v532
        %vm919 = vcmp.gt.f32.partialorder %v803, %v536
        %vm920 = vcmp.gt.f32.partialorder %v808, %v532
        %vm921 = vcmp.gt.f32.partialorder %v808, %v536
        %vm922 = vcmp.gt.f32.partialorder %v813, %v532
        %vm923 = vcmp.gt.f32.partialorder %v813, %v536
        %vm924 = vcmp.gt.f32.partialorder %v818, %v532
        %vm925 = vcmp.gt.f32.partialorder %v818, %v536
        %vm926 = vcmp.gt.f32.partialorder %v823, %v532
        %vm927 = vcmp.gt.f32.partialorder %v823, %v536
        %vm928 = vcmp.gt.f32.partialorder %v828, %v532
        %vm929 = vcmp.gt.f32.partialorder %v828, %v536
        %vm930 = vcmp.gt.f32.partialorder %v833, %v532
        %vm931 = vcmp.gt.f32.partialorder %v833, %v536
        %vm932 = vcmp.gt.f32.partialorder %v838, %v532
        %vm933 = vcmp.gt.f32.partialorder %v838, %v536
        %vm934 = vcmp.gt.f32.partialorder %v843, %v532
        %vm935 = vcmp.gt.f32.partialorder %v843, %v536
        %vm936 = vcmp.gt.f32.partialorder %v848, %v532
        %vm937 = vcmp.gt.f32.partialorder %v848, %v536
        %vm938 = vcmp.gt.f32.partialorder %v853, %v532
        %vm939 = vcmp.gt.f32.partialorder %v853, %v536
        %vm940 = vcmp.gt.f32.partialorder %v858, %v532
        %vm941 = vcmp.gt.f32.partialorder %v858, %v536
        %vm942 = vcmp.gt.f32.partialorder %v863, %v532
        %vm943 = vcmp.gt.f32.partialorder %v863, %v536
        %vm944 = vcmp.gt.f32.partialorder %v868, %v532
        %vm945 = vcmp.gt.f32.partialorder %v868, %v536
        %vm946 = vcmp.gt.f32.partialorder %v873, %v532
        %vm947 = vcmp.gt.f32.partialorder %v873, %v536
        %vm948 = vcmp.gt.f32.partialorder %v878, %v532
        %vm949 = vcmp.gt.f32.partialorder %v878, %v536
        %vm950 = vcmp.gt.f32.partialorder %v883, %v532
        %vm951 = vcmp.gt.f32.partialorder %v883, %v536
        %vm952 = vcmp.gt.f32.partialorder %v888, %v532
        %vm953 = vcmp.gt.f32.partialorder %v888, %v536
        %v954 = vsel %vm890, 1, 0
        %v955 = vsel %vm891, 1, 0
        %v956 = vsel %vm892, 1, 0
        %v957 = vsel %vm893, 1, 0
        %v958 = vsel %vm894, 1, 0
        %v959 = vsel %vm895, 1, 0
        %v960 = vsel %vm896, 1, 0
        %v961 = vsel %vm897, 1, 0
        %v962 = vsel %vm898, 1, 0
        %v963 = vsel %vm899, 1, 0
        %v964 = vsel %vm900, 1, 0
        %v965 = vsel %vm901, 1, 0
        %v966 = vsel %vm902, 1, 0
        %v967 = vsel %vm903, 1, 0
        %v968 = vsel %vm904, 1, 0
        %v969 = vsel %vm905, 1, 0
        %v970 = vsel %vm906, 1, 0
        %v971 = vsel %vm907, 1, 0
        %v972 = vsel %vm908, 1, 0
        %v973 = vsel %vm909, 1, 0
        %v974 = vsel %vm910, 1, 0
        %v975 = vsel %vm911, 1, 0
        %v976 = vsel %vm912, 1, 0
        %v977 = vsel %vm913, 1, 0
        %v978 = vsel %vm914, 1, 0
        %v979 = vsel %vm915, 1, 0
        %v980 = vsel %vm916, 1, 0
        %v981 = vsel %vm917, 1, 0
        %v982 = vsel %vm918, 1, 0
        %v983 = vsel %vm919, 1, 0
        %v984 = vsel %vm920, 1, 0
        %v985 = vsel %vm921, 1, 0
        %v986 = vsel %vm922, 1, 0
        %v987 = vsel %vm923, 1, 0
        %v988 = vsel %vm924, 1, 0
        %v989 = vsel %vm925, 1, 0
        %v990 = vsel %vm926, 1, 0
        %v991 = vsel %vm927, 1, 0
        %v992 = vsel %vm928, 1, 0
        %v993 = vsel %vm929, 1, 0
        %v994 = vsel %vm930, 1, 0
        %v995 = vsel %vm931, 1, 0
        %v996 = vsel %vm932, 1, 0
        %v997 = vsel %vm933, 1, 0
        %v998 = vsel %vm934, 1, 0
        %v999 = vsel %vm935, 1, 0
        %v1000 = vsel %vm936, 1, 0
        %v1001 = vsel %vm937, 1, 0
        %v1002 = vsel %vm938, 1, 0
        %v1003 = vsel %vm939, 1, 0
        %v1004 = vsel %vm940, 1, 0
        %v1005 = vsel %vm941, 1, 0
        %v1006 = vsel %vm942, 1, 0
        %v1007 = vsel %vm943, 1, 0
        %v1008 = vsel %vm944, 1, 0
        %v1009 = vsel %vm945, 1, 0
        %v1010 = vsel %vm946, 1, 0
        %v1011 = vsel %vm947, 1, 0
        %v1012 = vsel %vm948, 1, 0
        %v1013 = vsel %vm949, 1, 0
        %v1014 = vsel %vm950, 1, 0
        %v1015 = vsel %vm951, 1, 0
        %v1016 = vsel %vm952, 1, 0
        %v1017 = vsel %vm953, 1, 0
        %v1018 = vcvt.s32.f32 %v954
        %v1019 = vcvt.s32.f32 %v955
        %v1020 = vcvt.s32.f32 %v956
        %v1021 = vcvt.s32.f32 %v957
        %v1022 = vcvt.s32.f32 %v958
        %v1023 = vcvt.s32.f32 %v959
        %v1024 = vcvt.s32.f32 %v960
        %v1025 = vcvt.s32.f32 %v961
        %v1026 = vcvt.s32.f32 %v962
        %v1027 = vcvt.s32.f32 %v963
        %v1028 = vcvt.s32.f32 %v964
        %v1029 = vcvt.s32.f32 %v965
        %v1030 = vcvt.s32.f32 %v966
        %v1031 = vcvt.s32.f32 %v967
        %v1032 = vcvt.s32.f32 %v968
        %v1033 = vcvt.s32.f32 %v969
        %v1034 = vcvt.s32.f32 %v970
        %v1035 = vcvt.s32.f32 %v971
        %v1036 = vcvt.s32.f32 %v972
        %v1037 = vcvt.s32.f32 %v973
        %v1038 = vcvt.s32.f32 %v974
        %v1039 = vcvt.s32.f32 %v975
        %v1040 = vcvt.s32.f32 %v976
        %v1041 = vcvt.s32.f32 %v977
        %v1042 = vcvt.s32.f32 %v978
        %v1043 = vcvt.s32.f32 %v979
        %v1044 = vcvt.s32.f32 %v980
        %v1045 = vcvt.s32.f32 %v981
        %v1046 = vcvt.s32.f32 %v982
        %v1047 = vcvt.s32.f32 %v983
        %v1048 = vcvt.s32.f32 %v984
        %v1049 = vcvt.s32.f32 %v985
        %v1050 = vcvt.s32.f32 %v986
        %v1051 = vcvt.s32.f32 %v987
        %v1052 = vcvt.s32.f32 %v988
        %v1053 = vcvt.s32.f32 %v989
        %v1054 = vcvt.s32.f32 %v990
        %v1055 = vcvt.s32.f32 %v991
        %v1056 = vcvt.s32.f32 %v992
        %v1057 = vcvt.s32.f32 %v993
        %v1058 = vcvt.s32.f32 %v994
        %v1059 = vcvt.s32.f32 %v995
        %v1060 = vcvt.s32.f32 %v996
        %v1061 = vcvt.s32.f32 %v997
        %v1062 = vcvt.s32.f32 %v998
        %v1063 = vcvt.s32.f32 %v999
        %v1064 = vcvt.s32.f32 %v1000
        %v1065 = vcvt.s32.f32 %v1001
        %v1066 = vcvt.s32.f32 %v1002
        %v1067 = vcvt.s32.f32 %v1003
        %v1068 = vcvt.s32.f32 %v1004
        %v1069 = vcvt.s32.f32 %v1005
        %v1070 = vcvt.s32.f32 %v1006
        %v1071 = vcvt.s32.f32 %v1007
        %v1072 = vcvt.s32.f32 %v1008
        %v1073 = vcvt.s32.f32 %v1009
        %v1074 = vcvt.s32.f32 %v1010
        %v1075 = vcvt.s32.f32 %v1011
        %v1076 = vcvt.s32.f32 %v1012
        %v1077 = vcvt.s32.f32 %v1013
        %v1078 = vcvt.s32.f32 %v1014
        %v1079 = vcvt.s32.f32 %v1015
        %v1080 = vcvt.s32.f32 %v1016
        %v1081 = vcvt.s32.f32 %v1017
        %vm1082 = vcmp.eq.f32.partialorder %v733, %v532
        %vm1083 = vcmp.eq.f32.partialorder %v733, %v536
        %vm1084 = vcmp.eq.f32.partialorder %v738, %v532
        %vm1085 = vcmp.eq.f32.partialorder %v738, %v536
        %vm1086 = vcmp.eq.f32.partialorder %v743, %v532
        %vm1087 = vcmp.eq.f32.partialorder %v743, %v536
        %vm1088 = vcmp.eq.f32.partialorder %v748, %v532
        %vm1089 = vcmp.eq.f32.partialorder %v748, %v536
        %vm1090 = vcmp.eq.f32.partialorder %v753, %v532
        %vm1091 = vcmp.eq.f32.partialorder %v753, %v536
        %vm1092 = vcmp.eq.f32.partialorder %v758, %v532
        %vm1093 = vcmp.eq.f32.partialorder %v758, %v536
        %vm1094 = vcmp.eq.f32.partialorder %v763, %v532
        %vm1095 = vcmp.eq.f32.partialorder %v763, %v536
        %vm1096 = vcmp.eq.f32.partialorder %v768, %v532
        %vm1097 = vcmp.eq.f32.partialorder %v768, %v536
        %vm1098 = vcmp.eq.f32.partialorder %v773, %v532
        %vm1099 = vcmp.eq.f32.partialorder %v773, %v536
        %vm1100 = vcmp.eq.f32.partialorder %v778, %v532
        %vm1101 = vcmp.eq.f32.partialorder %v778, %v536
        %vm1102 = vcmp.eq.f32.partialorder %v783, %v532
        %vm1103 = vcmp.eq.f32.partialorder %v783, %v536
        %vm1104 = vcmp.eq.f32.partialorder %v788, %v532
        %vm1105 = vcmp.eq.f32.partialorder %v788, %v536
        %vm1106 = vcmp.eq.f32.partialorder %v793, %v532
        %vm1107 = vcmp.eq.f32.partialorder %v793, %v536
        %vm1108 = vcmp.eq.f32.partialorder %v798, %v532
        %vm1109 = vcmp.eq.f32.partialorder %v798, %v536
        %vm1110 = vcmp.eq.f32.partialorder %v803, %v532
        %vm1111 = vcmp.eq.f32.partialorder %v803, %v536
        %vm1112 = vcmp.eq.f32.partialorder %v808, %v532
        %vm1113 = vcmp.eq.f32.partialorder %v808, %v536
        %vm1114 = vcmp.eq.f32.partialorder %v813, %v532
        %vm1115 = vcmp.eq.f32.partialorder %v813, %v536
        %vm1116 = vcmp.eq.f32.partialorder %v818, %v532
        %vm1117 = vcmp.eq.f32.partialorder %v818, %v536
        %vm1118 = vcmp.eq.f32.partialorder %v823, %v532
        %vm1119 = vcmp.eq.f32.partialorder %v823, %v536
        %vm1120 = vcmp.eq.f32.partialorder %v828, %v532
        %vm1121 = vcmp.eq.f32.partialorder %v828, %v536
        %vm1122 = vcmp.eq.f32.partialorder %v833, %v532
        %vm1123 = vcmp.eq.f32.partialorder %v833, %v536
        %vm1124 = vcmp.eq.f32.partialorder %v838, %v532
        %vm1125 = vcmp.eq.f32.partialorder %v838, %v536
        %vm1126 = vcmp.eq.f32.partialorder %v843, %v532
        %vm1127 = vcmp.eq.f32.partialorder %v843, %v536
        %vm1128 = vcmp.eq.f32.partialorder %v848, %v532
        %vm1129 = vcmp.eq.f32.partialorder %v848, %v536
        %vm1130 = vcmp.eq.f32.partialorder %v853, %v532
        %vm1131 = vcmp.eq.f32.partialorder %v853, %v536
        %vm1132 = vcmp.eq.f32.partialorder %v858, %v532
        %vm1133 = vcmp.eq.f32.partialorder %v858, %v536
        %vm1134 = vcmp.eq.f32.partialorder %v863, %v532
        %vm1135 = vcmp.eq.f32.partialorder %v863, %v536
        %vm1136 = vcmp.eq.f32.partialorder %v868, %v532
        %vm1137 = vcmp.eq.f32.partialorder %v868, %v536
        %vm1138 = vcmp.eq.f32.partialorder %v873, %v532
        %vm1139 = vcmp.eq.f32.partialorder %v873, %v536
        %vm1140 = vcmp.eq.f32.partialorder %v878, %v532
        %vm1141 = vcmp.eq.f32.partialorder %v878, %v536
        %vm1142 = vcmp.eq.f32.partialorder %v883, %v532
        %vm1143 = vcmp.eq.f32.partialorder %v883, %v536
        %vm1144 = vcmp.eq.f32.partialorder %v888, %v532
        %vm1145 = vcmp.eq.f32.partialorder %v888, %v536
        %vm1146 = vcmp.lt.s32.totalorder %v698, %v527
        %vm1147 = vcmp.lt.s32.totalorder %v698, %v528
        %vm1148 = vcmp.lt.s32.totalorder %v699, %v527
        %vm1149 = vcmp.lt.s32.totalorder %v699, %v528
        %vm1150 = vcmp.lt.s32.totalorder %v700, %v527
        %vm1151 = vcmp.lt.s32.totalorder %v700, %v528
        %vm1152 = vcmp.lt.s32.totalorder %v701, %v527
        %vm1153 = vcmp.lt.s32.totalorder %v701, %v528
        %vm1154 = vcmp.lt.s32.totalorder %v702, %v527
        %vm1155 = vcmp.lt.s32.totalorder %v702, %v528
        %vm1156 = vcmp.lt.s32.totalorder %v703, %v527
        %vm1157 = vcmp.lt.s32.totalorder %v703, %v528
        %vm1158 = vcmp.lt.s32.totalorder %v704, %v527
        %vm1159 = vcmp.lt.s32.totalorder %v704, %v528
        %vm1160 = vcmp.lt.s32.totalorder %v705, %v527
        %vm1161 = vcmp.lt.s32.totalorder %v705, %v528
        %vm1162 = vcmp.lt.s32.totalorder %v706, %v527
        %vm1163 = vcmp.lt.s32.totalorder %v706, %v528
        %vm1164 = vcmp.lt.s32.totalorder %v707, %v527
        %vm1165 = vcmp.lt.s32.totalorder %v707, %v528
        %vm1166 = vcmp.lt.s32.totalorder %v708, %v527
        %vm1167 = vcmp.lt.s32.totalorder %v708, %v528
        %vm1168 = vcmp.lt.s32.totalorder %v709, %v527
        %vm1169 = vcmp.lt.s32.totalorder %v709, %v528
        %vm1170 = vcmp.lt.s32.totalorder %v710, %v527
        %vm1171 = vcmp.lt.s32.totalorder %v710, %v528
        %vm1172 = vcmp.lt.s32.totalorder %v711, %v527
        %vm1173 = vcmp.lt.s32.totalorder %v711, %v528
        %vm1174 = vcmp.lt.s32.totalorder %v712, %v527
        %vm1175 = vcmp.lt.s32.totalorder %v712, %v528
        %vm1176 = vcmp.lt.s32.totalorder %v713, %v527
        %vm1177 = vcmp.lt.s32.totalorder %v713, %v528
        %vm1178 = vcmp.lt.s32.totalorder %v714, %v527
        %vm1179 = vcmp.lt.s32.totalorder %v714, %v528
        %vm1180 = vcmp.lt.s32.totalorder %v715, %v527
        %vm1181 = vcmp.lt.s32.totalorder %v715, %v528
        %vm1182 = vcmp.lt.s32.totalorder %v716, %v527
        %vm1183 = vcmp.lt.s32.totalorder %v716, %v528
        %vm1184 = vcmp.lt.s32.totalorder %v717, %v527
        %vm1185 = vcmp.lt.s32.totalorder %v717, %v528
        %vm1186 = vcmp.lt.s32.totalorder %v718, %v527
        %vm1187 = vcmp.lt.s32.totalorder %v718, %v528
        %vm1188 = vcmp.lt.s32.totalorder %v719, %v527
        %vm1189 = vcmp.lt.s32.totalorder %v719, %v528
        %vm1190 = vcmp.lt.s32.totalorder %v720, %v527
        %vm1191 = vcmp.lt.s32.totalorder %v720, %v528
        %vm1192 = vcmp.lt.s32.totalorder %v721, %v527
        %vm1193 = vcmp.lt.s32.totalorder %v721, %v528
        %vm1194 = vcmp.lt.s32.totalorder %v722, %v527
        %vm1195 = vcmp.lt.s32.totalorder %v722, %v528
        %vm1196 = vcmp.lt.s32.totalorder %v723, %v527
        %vm1197 = vcmp.lt.s32.totalorder %v723, %v528
        %vm1198 = vcmp.lt.s32.totalorder %v724, %v527
        %vm1199 = vcmp.lt.s32.totalorder %v724, %v528
        %vm1200 = vcmp.lt.s32.totalorder %v725, %v527
        %vm1201 = vcmp.lt.s32.totalorder %v725, %v528
        %vm1202 = vcmp.lt.s32.totalorder %v726, %v527
        %vm1203 = vcmp.lt.s32.totalorder %v726, %v528
        %vm1204 = vcmp.lt.s32.totalorder %v727, %v527
        %vm1205 = vcmp.lt.s32.totalorder %v727, %v528
        %vm1206 = vcmp.lt.s32.totalorder %v728, %v527
        %vm1207 = vcmp.lt.s32.totalorder %v728, %v528
        %vm1208 = vcmp.lt.s32.totalorder %v729, %v527
        %vm1209 = vcmp.lt.s32.totalorder %v729, %v528
        %vm1210 = vmand %vm1082, %vm1146
        %vm1211 = vmand %vm1083, %vm1147
        %vm1212 = vmand %vm1084, %vm1148
        %vm1213 = vmand %vm1085, %vm1149
        %vm1214 = vmand %vm1086, %vm1150
        %vm1215 = vmand %vm1087, %vm1151
        %vm1216 = vmand %vm1088, %vm1152
        %vm1217 = vmand %vm1089, %vm1153
        %vm1218 = vmand %vm1090, %vm1154
        %vm1219 = vmand %vm1091, %vm1155
        %vm1220 = vmand %vm1092, %vm1156
        %vm1221 = vmand %vm1093, %vm1157
        %vm1222 = vmand %vm1094, %vm1158
        %vm1223 = vmand %vm1095, %vm1159
        %vm1224 = vmand %vm1096, %vm1160
        %vm1225 = vmand %vm1097, %vm1161
        %vm1226 = vmand %vm1098, %vm1162
        %vm1227 = vmand %vm1099, %vm1163
        %vm1228 = vmand %vm1100, %vm1164
        %vm1229 = vmand %vm1101, %vm1165
        %vm1230 = vmand %vm1102, %vm1166
        %vm1231 = vmand %vm1103, %vm1167
        %vm1232 = vmand %vm1104, %vm1168
        %vm1233 = vmand %vm1105, %vm1169
        %vm1234 = vmand %vm1106, %vm1170
        %vm1235 = vmand %vm1107, %vm1171
        %vm1236 = vmand %vm1108, %vm1172
        %vm1237 = vmand %vm1109, %vm1173
        %vm1238 = vmand %vm1110, %vm1174
        %vm1239 = vmand %vm1111, %vm1175
        %vm1240 = vmand %vm1112, %vm1176
        %vm1241 = vmand %vm1113, %vm1177
        %vm1242 = vmand %vm1114, %vm1178
        %vm1243 = vmand %vm1115, %vm1179
        %vm1244 = vmand %vm1116, %vm1180
        %vm1245 = vmand %vm1117, %vm1181
        %vm1246 = vmand %vm1118, %vm1182
        %vm1247 = vmand %vm1119, %vm1183
        %vm1248 = vmand %vm1120, %vm1184
        %vm1249 = vmand %vm1121, %vm1185
        %vm1250 = vmand %vm1122, %vm1186
        %vm1251 = vmand %vm1123, %vm1187
        %vm1252 = vmand %vm1124, %vm1188
        %vm1253 = vmand %vm1125, %vm1189
        %vm1254 = vmand %vm1126, %vm1190
        %vm1255 = vmand %vm1127, %vm1191
        %vm1256 = vmand %vm1128, %vm1192
        %vm1257 = vmand %vm1129, %vm1193
        %vm1258 = vmand %vm1130, %vm1194
        %vm1259 = vmand %vm1131, %vm1195
        %vm1260 = vmand %vm1132, %vm1196
        %vm1261 = vmand %vm1133, %vm1197
        %vm1262 = vmand %vm1134, %vm1198
        %vm1263 = vmand %vm1135, %vm1199
        %vm1264 = vmand %vm1136, %vm1200
        %vm1265 = vmand %vm1137, %vm1201
        %vm1266 = vmand %vm1138, %vm1202
        %vm1267 = vmand %vm1139, %vm1203
        %vm1268 = vmand %vm1140, %vm1204
        %vm1269 = vmand %vm1141, %vm1205
        %vm1270 = vmand %vm1142, %vm1206
        %vm1271 = vmand %vm1143, %vm1207
        %vm1272 = vmand %vm1144, %vm1208
        %vm1273 = vmand %vm1145, %vm1209
        %v1274 = vsel %vm1210, 1, 0
        %v1275 = vsel %vm1211, 1, 0
        %v1276 = vsel %vm1212, 1, 0
        %v1277 = vsel %vm1213, 1, 0
        %v1278 = vsel %vm1214, 1, 0
        %v1279 = vsel %vm1215, 1, 0
        %v1280 = vsel %vm1216, 1, 0
        %v1281 = vsel %vm1217, 1, 0
        %v1282 = vsel %vm1218, 1, 0
        %v1283 = vsel %vm1219, 1, 0
        %v1284 = vsel %vm1220, 1, 0
        %v1285 = vsel %vm1221, 1, 0
        %v1286 = vsel %vm1222, 1, 0
        %v1287 = vsel %vm1223, 1, 0
        %v1288 = vsel %vm1224, 1, 0
        %v1289 = vsel %vm1225, 1, 0
        %v1290 = vsel %vm1226, 1, 0
        %v1291 = vsel %vm1227, 1, 0
        %v1292 = vsel %vm1228, 1, 0
        %v1293 = vsel %vm1229, 1, 0
        %v1294 = vsel %vm1230, 1, 0
        %v1295 = vsel %vm1231, 1, 0
        %v1296 = vsel %vm1232, 1, 0
        %v1297 = vsel %vm1233, 1, 0
        %v1298 = vsel %vm1234, 1, 0
        %v1299 = vsel %vm1235, 1, 0
        %v1300 = vsel %vm1236, 1, 0
        %v1301 = vsel %vm1237, 1, 0
        %v1302 = vsel %vm1238, 1, 0
        %v1303 = vsel %vm1239, 1, 0
        %v1304 = vsel %vm1240, 1, 0
        %v1305 = vsel %vm1241, 1, 0
        %v1306 = vsel %vm1242, 1, 0
        %v1307 = vsel %vm1243, 1, 0
        %v1308 = vsel %vm1244, 1, 0
        %v1309 = vsel %vm1245, 1, 0
        %v1310 = vsel %vm1246, 1, 0
        %v1311 = vsel %vm1247, 1, 0
        %v1312 = vsel %vm1248, 1, 0
        %v1313 = vsel %vm1249, 1, 0
        %v1314 = vsel %vm1250, 1, 0
        %v1315 = vsel %vm1251, 1, 0
        %v1316 = vsel %vm1252, 1, 0
        %v1317 = vsel %vm1253, 1, 0
        %v1318 = vsel %vm1254, 1, 0
        %v1319 = vsel %vm1255, 1, 0
        %v1320 = vsel %vm1256, 1, 0
        %v1321 = vsel %vm1257, 1, 0
        %v1322 = vsel %vm1258, 1, 0
        %v1323 = vsel %vm1259, 1, 0
        %v1324 = vsel %vm1260, 1, 0
        %v1325 = vsel %vm1261, 1, 0
        %v1326 = vsel %vm1262, 1, 0
        %v1327 = vsel %vm1263, 1, 0
        %v1328 = vsel %vm1264, 1, 0
        %v1329 = vsel %vm1265, 1, 0
        %v1330 = vsel %vm1266, 1, 0
        %v1331 = vsel %vm1267, 1, 0
        %v1332 = vsel %vm1268, 1, 0
        %v1333 = vsel %vm1269, 1, 0
        %v1334 = vsel %vm1270, 1, 0
        %v1335 = vsel %vm1271, 1, 0
        %v1336 = vsel %vm1272, 1, 0
        %v1337 = vsel %vm1273, 1, 0
        %v1338 = vcvt.s32.f32 %v1274
        %v1339 = vcvt.s32.f32 %v1275
        %v1340 = vcvt.s32.f32 %v1276
        %v1341 = vcvt.s32.f32 %v1277
        %v1342 = vcvt.s32.f32 %v1278
        %v1343 = vcvt.s32.f32 %v1279
        %v1344 = vcvt.s32.f32 %v1280
        %v1345 = vcvt.s32.f32 %v1281
        %v1346 = vcvt.s32.f32 %v1282
        %v1347 = vcvt.s32.f32 %v1283
        %v1348 = vcvt.s32.f32 %v1284
        %v1349 = vcvt.s32.f32 %v1285
        %v1350 = vcvt.s32.f32 %v1286
        %v1351 = vcvt.s32.f32 %v1287
        %v1352 = vcvt.s32.f32 %v1288
        %v1353 = vcvt.s32.f32 %v1289
        %v1354 = vcvt.s32.f32 %v1290
        %v1355 = vcvt.s32.f32 %v1291
        %v1356 = vcvt.s32.f32 %v1292
        %v1357 = vcvt.s32.f32 %v1293
        %v1358 = vcvt.s32.f32 %v1294
        %v1359 = vcvt.s32.f32 %v1295
        %v1360 = vcvt.s32.f32 %v1296
        %v1361 = vcvt.s32.f32 %v1297
        %v1362 = vcvt.s32.f32 %v1298
        %v1363 = vcvt.s32.f32 %v1299
        %v1364 = vcvt.s32.f32 %v1300
        %v1365 = vcvt.s32.f32 %v1301
        %v1366 = vcvt.s32.f32 %v1302
        %v1367 = vcvt.s32.f32 %v1303
        %v1368 = vcvt.s32.f32 %v1304
        %v1369 = vcvt.s32.f32 %v1305
        %v1370 = vcvt.s32.f32 %v1306
        %v1371 = vcvt.s32.f32 %v1307
        %v1372 = vcvt.s32.f32 %v1308
        %v1373 = vcvt.s32.f32 %v1309
        %v1374 = vcvt.s32.f32 %v1310
        %v1375 = vcvt.s32.f32 %v1311
        %v1376 = vcvt.s32.f32 %v1312
        %v1377 = vcvt.s32.f32 %v1313
        %v1378 = vcvt.s32.f32 %v1314
        %v1379 = vcvt.s32.f32 %v1315
        %v1380 = vcvt.s32.f32 %v1316
        %v1381 = vcvt.s32.f32 %v1317
        %v1382 = vcvt.s32.f32 %v1318
        %v1383 = vcvt.s32.f32 %v1319
        %v1384 = vcvt.s32.f32 %v1320
        %v1385 = vcvt.s32.f32 %v1321
        %v1386 = vcvt.s32.f32 %v1322
        %v1387 = vcvt.s32.f32 %v1323
        %v1388 = vcvt.s32.f32 %v1324
        %v1389 = vcvt.s32.f32 %v1325
        %v1390 = vcvt.s32.f32 %v1326
        %v1391 = vcvt.s32.f32 %v1327
        %v1392 = vcvt.s32.f32 %v1328
        %v1393 = vcvt.s32.f32 %v1329
        %v1394 = vcvt.s32.f32 %v1330
        %v1395 = vcvt.s32.f32 %v1331
        %v1396 = vcvt.s32.f32 %v1332
        %v1397 = vcvt.s32.f32 %v1333
        %v1398 = vcvt.s32.f32 %v1334
        %v1399 = vcvt.s32.f32 %v1335
        %v1400 = vcvt.s32.f32 %v1336
        %v1401 = vcvt.s32.f32 %v1337
        %v1402 = vadd.f32 %v1018, %v1338
        %v1403 = vadd.f32 %v1019, %v1339
        %v1404 = vadd.f32 %v1020, %v1340
        %v1405 = vadd.f32 %v1021, %v1341
        %v1406 = vadd.f32 %v1022, %v1342
        %v1407 = vadd.f32 %v1023, %v1343
        %v1408 = vadd.f32 %v1024, %v1344
        %v1409 = vadd.f32 %v1025, %v1345
        %v1410 = vadd.f32 %v1026, %v1346
        %v1411 = vadd.f32 %v1027, %v1347
        %v1412 = vadd.f32 %v1028, %v1348
        %v1413 = vadd.f32 %v1029, %v1349
        %v1414 = vadd.f32 %v1030, %v1350
        %v1415 = vadd.f32 %v1031, %v1351
        %v1416 = vadd.f32 %v1032, %v1352
        %v1417 = vadd.f32 %v1033, %v1353
        %v1418 = vadd.f32 %v1034, %v1354
        %v1419 = vadd.f32 %v1035, %v1355
        %v1420 = vadd.f32 %v1036, %v1356
        %v1421 = vadd.f32 %v1037, %v1357
        %v1422 = vadd.f32 %v1038, %v1358
        %v1423 = vadd.f32 %v1039, %v1359
        %v1424 = vadd.f32 %v1040, %v1360
        %v1425 = vadd.f32 %v1041, %v1361
        %v1426 = vadd.f32 %v1042, %v1362
        %v1427 = vadd.f32 %v1043, %v1363
        %v1428 = vadd.f32 %v1044, %v1364
        %v1429 = vadd.f32 %v1045, %v1365
        %v1430 = vadd.f32 %v1046, %v1366
        %v1431 = vadd.f32 %v1047, %v1367
        %v1432 = vadd.f32 %v1048, %v1368
        %v1433 = vadd.f32 %v1049, %v1369
        %v1434 = vadd.f32 %v1050, %v1370
        %v1435 = vadd.f32 %v1051, %v1371
        %v1436 = vadd.f32 %v1052, %v1372
        %v1437 = vadd.f32 %v1053, %v1373
        %v1438 = vadd.f32 %v1054, %v1374
        %v1439 = vadd.f32 %v1055, %v1375
        %v1440 = vadd.f32 %v1056, %v1376
        %v1441 = vadd.f32 %v1057, %v1377
        %v1442 = vadd.f32 %v1058, %v1378
        %v1443 = vadd.f32 %v1059, %v1379
        %v1444 = vadd.f32 %v1060, %v1380
        %v1445 = vadd.f32 %v1061, %v1381
        %v1446 = vadd.f32 %v1062, %v1382
        %v1447 = vadd.f32 %v1063, %v1383
        %v1448 = vadd.f32 %v1064, %v1384
        %v1449 = vadd.f32 %v1065, %v1385
        %v1450 = vadd.f32 %v1066, %v1386
        %v1451 = vadd.f32 %v1067, %v1387
        %v1452 = vadd.f32 %v1068, %v1388
        %v1453 = vadd.f32 %v1069, %v1389
        %v1454 = vadd.f32 %v1070, %v1390
        %v1455 = vadd.f32 %v1071, %v1391
        %v1456 = vadd.f32 %v1072, %v1392
        %v1457 = vadd.f32 %v1073, %v1393
        %v1458 = vadd.f32 %v1074, %v1394
        %v1459 = vadd.f32 %v1075, %v1395
        %v1460 = vadd.f32 %v1076, %v1396
        %v1461 = vadd.f32 %v1077, %v1397
        %v1462 = vadd.f32 %v1078, %v1398
        %v1463 = vadd.f32 %v1079, %v1399
        %v1464 = vadd.f32 %v1080, %v1400
        %v1465 = vadd.f32 %v1081, %v1401
        %v1466 = vadd.f32 %v1402, %v1404
        %v1467 = vadd.f32 %v1466, %v1406
        %v1468 = vadd.f32 %v1467, %v1408
        %v1469 = vadd.f32 %v1468, %v1410
        %v1470 = vadd.f32 %v1469, %v1412
        %v1471 = vadd.f32 %v1470, %v1414
        %v1472 = vadd.f32 %v1471, %v1416
        %v1473 = vadd.f32 %v1472, %v1418
        %v1474 = vadd.f32 %v1473, %v1420
        %v1475 = vadd.f32 %v1474, %v1422
        %v1476 = vadd.f32 %v1475, %v1424
        %v1477 = vadd.f32 %v1476, %v1426
        %v1478 = vadd.f32 %v1477, %v1428
        %v1479 = vadd.f32 %v1478, %v1430
        %v1480 = vadd.f32 %v1479, %v1432
        %v1481 = vadd.f32 %v1480, %v1434
        %v1482 = vadd.f32 %v1481, %v1436
        %v1483 = vadd.f32 %v1482, %v1438
        %v1484 = vadd.f32 %v1483, %v1440
        %v1485 = vadd.f32 %v1484, %v1442
        %v1486 = vadd.f32 %v1485, %v1444
        %v1487 = vadd.f32 %v1486, %v1446
        %v1488 = vadd.f32 %v1487, %v1448
        %v1489 = vadd.f32 %v1488, %v1450
        %v1490 = vadd.f32 %v1489, %v1452
        %v1491 = vadd.f32 %v1490, %v1454
        %v1492 = vadd.f32 %v1491, %v1456
        %v1493 = vadd.f32 %v1492, %v1458
        %v1494 = vadd.f32 %v1493, %v1460
        %v1495 = vadd.f32 %v1494, %v1462
        %v1496 = vadd.f32 %v1495, %v1464
        %v1497 = vrot.slane %v1496, 4
        %v1498 = vadd.f32 %v1496, %v1497
        %v1499 = vrot.slane %v1498, 2
        %v1500 = vadd.f32 %v1498, %v1499
        %v1501 = vrot.slane %v1500, 1
        %v1502 = vadd.f32 %v1500, %v1501
        %v1503 = vadd.f32 %v1403, %v1405
        %v1504 = vadd.f32 %v1503, %v1407
        %v1505 = vadd.f32 %v1504, %v1409
        %v1506 = vadd.f32 %v1505, %v1411
        %v1507 = vadd.f32 %v1506, %v1413
        %v1508 = vadd.f32 %v1507, %v1415
        %v1509 = vadd.f32 %v1508, %v1417
        %v1510 = vadd.f32 %v1509, %v1419
        %v1511 = vadd.f32 %v1510, %v1421
        %v1512 = vadd.f32 %v1511, %v1423
        %v1513 = vadd.f32 %v1512, %v1425
        %v1514 = vadd.f32 %v1513, %v1427
        %v1515 = vadd.f32 %v1514, %v1429
        %v1516 = vadd.f32 %v1515, %v1431
        %v1517 = vadd.f32 %v1516, %v1433
        %v1518 = vadd.f32 %v1517, %v1435
        %v1519 = vadd.f32 %v1518, %v1437
        %v1520 = vadd.f32 %v1519, %v1439
        %v1521 = vadd.f32 %v1520, %v1441
        %v1522 = vadd.f32 %v1521, %v1443
        %v1523 = vadd.f32 %v1522, %v1445
        %v1524 = vadd.f32 %v1523, %v1447
        %v1525 = vadd.f32 %v1524, %v1449
        %v1526 = vadd.f32 %v1525, %v1451
        %v1527 = vadd.f32 %v1526, %v1453
        %v1528 = vadd.f32 %v1527, %v1455
        %v1529 = vadd.f32 %v1528, %v1457
        %v1530 = vadd.f32 %v1529, %v1459
        %v1531 = vadd.f32 %v1530, %v1461
        %v1532 = vadd.f32 %v1531, %v1463
        %v1533 = vadd.f32 %v1532, %v1465
        %v1534 = vrot.slane %v1533, 4
        %v1535 = vadd.f32 %v1533, %v1534
        %v1536 = vrot.slane %v1535, 2
        %v1537 = vadd.f32 %v1535, %v1536
        %v1538 = vrot.slane %v1537, 1
        %v1539 = vadd.f32 %v1537, %v1538
        %v1540 = vadd.f32 %v1502, 0.0
        %v1541 = vadd.f32 %v1539, 0.0
        %vm1542 = vcmp.lt.f32.partialorder %v1540, %v511
        %vm1543 = vcmp.lt.f32.partialorder %v1541, %v511
        %v1544 = vsel %vm1542, 1, 0
        %v1545 = vsel %vm1543, 1, 0
        %v1546 = vcvt.s32.f32 %v1544
        %v1547 = vcvt.s32.f32 %v1545
        %v1550 = vcombine.low %v1546, %v1547
        %v1552 = vunpack.c.l.s4 1966171168
        %v1553 = vunpack.c.0.s8 %v1552
        %v1554 = vlaneseq
        %v1555 = vshrl.u32 %v1554, 7
        %v1556 = vsub.s32 %v1553, %v1555
        %v1557 = vrot.slane %v1550, %v1556
        %v1559 = vunpack.c.l.s4 1966171168
        %v1560 = vunpack.c.0.s8 %v1559
        %v1561 = vlaneseq
        %v1562 = vshrl.u32 %v1561, 7
        %v1563 = vsub.s32 %v1560, %v1562
        %v1564 = vrot.slane %v1557, %v1563
        %v1566 = vmax.f32 %v365, %v1564
        %v1568 = vlaneseq
        %v1569 = vshrl.u32 %v1568, 7
        %v1570 = vsub.s32 0, %v1569
        %v1571 = vrot.slane %v1566, %v1570
        %v1572 = vlaneseq
        %v1573 = vshrl.u32 %v1572, 7
        %v1574 = vsub.s32 1, %v1573
        %v1575 = vrot.slane %v1566, %v1574
        %v1578 = vmul.f32 %v439, %v1571
        %v1579 = vmul.f32 %v440, %v1575
        %v1581 = vlaneseq
        %v1582 = vshrl.u32 %v1581, 7
        %v1583 = vsub.s32 0, %v1582
        %v1584 = vrot.slane %v368, %v1583
        %v1585 = vlaneseq
        %v1586 = vshrl.u32 %v1585, 7
        %v1587 = vsub.s32 1, %v1586
        %v1588 = vrot.slane %v368, %v1587
        %v1591 = vmul.f32 %v1578, %v1584
        %v1592 = vmul.f32 %v1579, %v1588
        %v1593 = vsel %vm477, %v1591, 0.0
        %v1594 = vsel %vm477, %v1592, 0.0
        %v1595 = vadd.f32 %v1593, %v1594
        %1596 = vadd.xlane.f32.xlu0 %v1595
        %v1597 = vpop.xlane.xlu0 %1596
        %v1598 = vrot.slane %v1597, 4
        %v1599 = vadd.f32 %v1597, %v1598
        %v1600 = vrot.slane %v1599, 2
        %v1601 = vadd.f32 %v1599, %v1600
        %v1602 = vrot.slane %v1601, 1
        %v1603 = vadd.f32 %v1601, %v1602
        %s1604 = vtos %v1603
        %v1605 = vstv %s1604
        %1606 = vst.msk [vmem:[%s354] sm:$0x1] %vm506, %v1605
        %p1607 = scmp.lt.s32.totalorder %s24, 1
        %s1608 = scalar_select %p1607, %s24, 1
        %s1609 = scalar_lea.vmem %s4, %s1608
        %p1610 = scmp.lt.s32.totalorder %s24, 1
        %s1611 = scalar_select %p1610, %s24, 1
        %s1612 = scalar_lea.vmem %s5, %s1611
        %p1613 = scmp.lt.s32.totalorder %s24, 1
        %s1614 = scalar_select %p1613, %s24, 1
        %s1615 = scalar_lea.vmem %s6, %s1614
        // Predicated region
        $region45: #{ssd_multibox_loss.1} parent=35 // pred_check
          %p1616 = pneg %p146
        $region46: #{ssd_multibox_loss.1} parent=35 // pred_check_branch
          %1618 = sbr.rel (%p1616) target = $region48
        $region47: #{ssd_multibox_loss.1} parent=35 // pred_region
          _
        $region48: #{ssd_multibox_loss.1} parent=35 // pred_fallthru
          _
        // Predicated region
        $region49: #{ssd_multibox_loss.1} parent=35 // pred_check
          %p1619 = pneg %p172
        $region50: #{ssd_multibox_loss.1} parent=35 // pred_check_branch
          %1621 = sbr.rel (%p1619) target = $region52
        $region51: #{ssd_multibox_loss.1} parent=35 // pred_region
          _
        $region52: #{ssd_multibox_loss.1} parent=35 // pred_fallthru
          _
        // Predicated region
        $region53: #{ssd_multibox_loss.1} parent=35 // pred_check
          %p1622 = pneg %p198
        $region54: #{ssd_multibox_loss.1} parent=35 // pred_check_branch
          %1624 = sbr.rel (%p1622) target = $region56
        $region55: #{ssd_multibox_loss.1} parent=35 // pred_region
          _
        $region56: #{ssd_multibox_loss.1} parent=35 // pred_fallthru
          _
      $region36: #{ssd_multibox_loss.1} parent=5 // pred_fallthru
        _
      %p1625 = scmp.le.s32.totalorder 2, %s19
      // Predicated region
      $region57: #{ssd_multibox_loss.1} parent=5 // pred_check
        %p1626 = pneg %p1625
      $region58: #{ssd_multibox_loss.1} parent=5 // pred_check_branch
        %1628 = sbr.rel (%p1626) target = $region60
      $region59: #{ssd_multibox_loss.1} parent=5 // pred_region
        %s1629 = ssub.s32 %s19, 2
        // Predicated region
        $region61: #{ssd_multibox_loss.1} parent=59 // pred_check
          %p1630 = pneg %p152
        $region62: #{ssd_multibox_loss.1} parent=59 // pred_check_branch
          %1632 = sbr.rel (%p1630) target = $region64
        $region63: #{ssd_multibox_loss.1} parent=59 // pred_region
          %p1633 = scmp.lt.s32.totalorder %s25, 1
          %s1634 = scalar_select %p1633, %s25, 1
          %s1635 = scalar_lea.vmem %s4, %s1634
        $region64: #{ssd_multibox_loss.1} parent=59 // pred_fallthru
          _
        // Predicated region
        $region65: #{ssd_multibox_loss.1} parent=59 // pred_check
          %p1636 = pneg %p178
        $region66: #{ssd_multibox_loss.1} parent=59 // pred_check_branch
          %1638 = sbr.rel (%p1636) target = $region68
        $region67: #{ssd_multibox_loss.1} parent=59 // pred_region
          %p1639 = scmp.lt.s32.totalorder %s25, 1
          %s1640 = scalar_select %p1639, %s25, 1
          %s1641 = scalar_lea.vmem %s5, %s1640
        $region68: #{ssd_multibox_loss.1} parent=59 // pred_fallthru
          _
        // Predicated region
        $region69: #{ssd_multibox_loss.1} parent=59 // pred_check
          %p1642 = pneg %p204
        $region70: #{ssd_multibox_loss.1} parent=59 // pred_check_branch
          %1644 = sbr.rel (%p1642) target = $region72
        $region71: #{ssd_multibox_loss.1} parent=59 // pred_region
          %p1645 = scmp.lt.s32.totalorder %s25, 1
          %s1646 = scalar_select %p1645, %s25, 1
          %s1647 = scalar_lea.vmem %s6, %s1646
        $region72: #{ssd_multibox_loss.1} parent=59 // pred_fallthru
          _
      $region60: #{ssd_multibox_loss.1} parent=5 // pred_fallthru
        _
    $region6: #{ssd_multibox_loss.1} parent=1 // loop_footer
      %s23 = sadd.s32 1, %s19
    $region7: #{ssd_multibox_loss.1} parent=1 // loop_footer_branch
      %18 = sbr.rel target = $region3
    $region8: #{ssd_multibox_loss.1} parent=1 // loop_exit
      _
    %1648 = vsyncpa [#allocation4], 1
    %s1649 = scalar_lea.sflag [#allocation4], 1
    %1650 = vsyncpa %s1649, 1
    %1651 = vsyncpa [#allocation6], 1
    %s1652 = scalar_lea.sflag [#allocation6], 1
    %1653 = vsyncpa %s1652, 1

</llo_original>
